<compile_context>
chip_gen: v7x
topology: tpu7x:2x2x1
jax: 0.10.0
libtpu: 0.0.40
codegen_flags: <defaults>
</compile_context>

<pallas_src>
import math
from functools import partial

import numpy as np
import jax
import jax.numpy as jnp
from jax import lax
from jax.experimental import pallas as pl
from jax.experimental.pallas import tpu as pltpu


def _sigmoid(x):
    # 0.5*(tanh(x/2)+1) == 1/(1+exp(-x)); single EUP tanh, no divide, no overflow.
    return 0.5 * (jnp.tanh(0.5 * x) + 1.0)


# ----------------------------------------------------------------------------
# Fused kernel: bidirectional GRU -> MHA -> (out_proj . fc) fold
# ----------------------------------------------------------------------------
def fused_bertner_kernel(
        xpair_ref,      # (S*B, 2I)  [x_t | x_{S-1-t}] time-major rows (t*B+b)
        h0_ref,         # (B, 2H)    [h0_fwd | h0_bwd]
        w_in_ref,       # (2I, 6H)   block-diag, cols [r_f r_b | z_f z_b | n_f n_b]
        b_in_ref,       # (1, 6H)    b_ih + b_hh(r,z) pre-added; b_hn excluded
        whh_ref,        # (2H, 6H)   block-diag recurrence weight (same col order)
        bhn_ref,        # (1, 2H)    [b_hn_f | b_hn_b]
        wqkv_ref,       # (E, 3E)    fused QKV (q columns pre-scaled by 1/sqrt(hd))
        bqkv_ref,       # (1, 3E)
        wvfold_ref,     # (NH, E)    per-head block-diag of wcomb = wfc @ wo
        bias_ref,       # (S*B, S*B) 0 / -1e30 cross-batch additive mask
        bcomb_ref,      # (1, 1)     bo @ wfc.T + bfc
        out_ref,        # (S*B, 1)   time-major rows (t*B+b)
        rnn_sc,         # VMEM scratch (S*B, E)
        *, num_heads):
    B, E = h0_ref.shape
    SB = xpair_ref.shape[0]
    S = SB // B
    H = E // 2
    hd = E // num_heads

    # ---------- GRU: one hoisted input projection for both directions --------
    gi = (jnp.dot(xpair_ref[...], w_in_ref[...],
                  preferred_element_type=jnp.float32)
          + b_in_ref[...])                                       # (SB, 6H)

    whh = whh_ref[...]                                           # (2H, 6H)
    bhn = jnp.broadcast_to(bhn_ref[...], (B, E))                 # hoisted broadcast
    h = h0_ref[...]                                              # (B, 2H) = [h_f | h_b]

    # Fully unrolled recurrence; ONE MXU push per step (block-diag whh), joint
    # gate math for both directions, per-step store into VMEM scratch.
    for t in range(S):
        gi_t = gi[t * B:(t + 1) * B, :]                          # (B, 6H) sublane slice
        gh = jnp.dot(h, whh, preferred_element_type=jnp.float32) # (B, 6H) critical path
        rz = _sigmoid(gi_t[:, :2 * E] + gh[:, :2 * E])           # [r_f r_b | z_f z_b]
        r = rz[:, :E]
        z = rz[:, E:]
        n = jnp.tanh(gi_t[:, 2 * E:] + r * (gh[:, 2 * E:] + bhn))
        h = (1.0 - z) * n + z * h                                # (B, 2H)
        tb = S - 1 - t
        rnn_sc[t * B:(t + 1) * B, 0:H] = h[:, 0:H]               # fwd state @ time t
        rnn_sc[tb * B:(tb + 1) * B, H:E] = h[:, H:E]             # bwd state @ time S-1-t

    # ---------- MHA (fused QKV) with folded out_proj . fc ---------------------
    rnn = rnn_sc[...]                                            # (SB, E)
    qkv = (jnp.dot(rnn, wqkv_ref[...], preferred_element_type=jnp.float32)
           + bqkv_ref[...])                                      # (SB, 3E), 1 push
    q = qkv[:, :E]
    k = qkv[:, E:2 * E]
    v = qkv[:, 2 * E:]

    # Per-head folded value weights in row form (NH, SB): one small dot_general,
    # no N=1 matmuls, no in-kernel transposes.
    vw_rows = lax.dot_general(wvfold_ref[...], v, (((1,), (1,)), ((), ())),
                              preferred_element_type=jnp.float32)

    bias = bias_ref[...]                                         # hoisted mask load
    acc = jnp.zeros((SB, SB), jnp.float32)
    for hh in range(num_heads):                                  # static, tiny
        lo, hi = hh * hd, (hh + 1) * hd
        # scores for ALL batches at once; cross-batch pairs masked to -1e30.
        s = lax.dot_general(q[:, lo:hi], k[:, lo:hi], (((1,), (1,)), ((), ())),
                            preferred_element_type=jnp.float32) + bias
        s = s - jnp.max(s, axis=-1, keepdims=True)
        p = jnp.exp(s)
        p = p * pl.reciprocal(jnp.sum(p, axis=-1, keepdims=True), approx=True)
        acc = acc + p * vw_rows[hh:hh + 1, :]                    # VPU accumulate
    ctx = jnp.sum(acc, axis=-1, keepdims=True)                   # single lane reduce
    # TODO(synk): at production S/B emit a lane-dense (B, S) output slab instead
    # of a trailing-1 column (masked-store lever); irrelevant at 16 elements.
    out_ref[...] = ctx + bcomb_ref[...]                          # (SB, 1)


def _full_spec(*shape):
    n = len(shape)
    return pl.BlockSpec(shape, lambda i: (0,) * n)


# ----------------------------------------------------------------------------
# bertner.forward (post-encoder): one fused pallas_call
# ----------------------------------------------------------------------------
def bertner_forward(bert_x, h0, prm, *, num_heads):
    # bert_x: (B, S, inpsize), h0: (bd*num_layers, B, hs)   (num_layers == 1 here)
    B, S, I = bert_x.shape
    H = h0.shape[-1]
    E = 2 * H
    hd = E // num_heads
    scale = 1.0 / math.sqrt(hd)
    f32 = jnp.float32

    wih_f, whh_f, bih_f, bhh_f = prm["gru_fwd"]
    wih_b, whh_b, bih_b, bhh_b = prm["gru_bwd"]
    wq, wk, wv, bq, bk, bv, wo, bo = prm["mha"]
    wfc, bfc = prm["fc_w"], prm["fc_b"]

    # ----- GRU weight packing: gate-pair-wise columns [r_f r_b | z_f z_b | n_f n_b]
    def pair_cols(mf, mb):
        # mf/mb: (rows, 3H) with cols [r z n]; returns (rows_f+rows_b, 6H) where
        # mf occupies the *_f column bands (zeros in *_b) and mb vice versa.
        zf = jnp.zeros((mf.shape[0], H), f32)
        zb = jnp.zeros((mb.shape[0], H), f32)
        top = jnp.concatenate([mf[:, 0:H], zf, mf[:, H:2 * H], zf,
                               mf[:, 2 * H:3 * H], zf], axis=1)
        bot = jnp.concatenate([zb, mb[:, 0:H], zb, mb[:, H:2 * H],
                               zb, mb[:, 2 * H:3 * H]], axis=1)
        return jnp.concatenate([top, bot], axis=0)

    w_in_blk = pair_cols(wih_f.T, wih_b.T)          # (2I, 6H)
    whh_blk = pair_cols(whh_f.T, whh_b.T)           # (2H, 6H)

    def gate_bias(bih, bhh):
        # b_ih(all gates) + b_hh(r,z); b_hn kept separate (it is scaled by r).
        return jnp.concatenate([bih[0:2 * H] + bhh[0:2 * H], bih[2 * H:3 * H]])

    bi_f = gate_bias(bih_f, bhh_f)
    bi_b = gate_bias(bih_b, bhh_b)
    b_in = jnp.concatenate([bi_f[0:H], bi_b[0:H], bi_f[H:2 * H], bi_b[H:2 * H],
                            bi_f[2 * H:3 * H], bi_b[2 * H:3 * H]]).reshape(1, 6 * H)
    bhn = jnp.concatenate([bhh_f[2 * H:3 * H], bhh_b[2 * H:3 * H]]).reshape(1, E)

    # ----- paired, time-major input: row (t*B+b) = [x[b,t] | x[b,S-1-t]] ------
    x_tm = jnp.transpose(bert_x, (1, 0, 2))                       # (S, B, I)
    x_pair = jnp.concatenate([x_tm, x_tm[::-1]], axis=-1).reshape(S * B, 2 * I)
    h0c = jnp.concatenate([h0[0], h0[1]], axis=-1)                # (B, 2H)

    # ----- fused QKV (q columns pre-scaled by 1/sqrt(hd)) ---------------------
    wqkv = jnp.concatenate([wq.T * scale, wk.T, wv.T], axis=1)    # (E, 3E)
    bqkv = jnp.concatenate([bq * scale, bk, bv]).reshape(1, 3 * E)

    # ----- fold out_proj (wo, bo) with the final Linear (wfc, bfc) ------------
    wcomb = (wfc @ wo).reshape(E)                                 # (E,)
    head_sel = (jnp.arange(E) // hd)[None, :] == jnp.arange(num_heads)[:, None]
    w_vfold = jnp.where(head_sel, wcomb[None, :], 0.0).astype(f32)  # (NH, E)
    bcomb = (bo @ wfc.T + bfc).reshape(1, 1)

    # ----- cross-batch additive mask for the batched score matmuls ------------
    idx = jnp.arange(S * B)
    same_b = (idx[:, None] % B) == (idx[None, :] % B)
    attn_bias = jnp.where(same_b, 0.0, -1e30).astype(f32)         # (SB, SB)

    # TODO(synk): at production roberta shapes (I=768, S>=128) grid over B with
    # dimension_semantics=("parallel",) for v7x's 2 TCs, tile the input
    # projection over S (Buffered pipelining), cast MXU operands to bf16 for
    # v5e, and set vmem_limit_bytes for v7x's 64 MiB budget. All are a wash or a
    # loss at these toy shapes, so grid stays (1,).
    kernel = partial(fused_bertner_kernel, num_heads=num_heads)
    out_tm = pl.pallas_call(
        kernel,
        out_shape=jax.ShapeDtypeStruct((S * B, 1), jnp.float32),
        grid=(1,),
        in_specs=[
            _full_spec(S * B, 2 * I),
            _full_spec(B, E),
            _full_spec(2 * I, 3 * E),
            _full_spec(1, 3 * E),
            _full_spec(E, 3 * E),
            _full_spec(1, E),
            _full_spec(E, 3 * E),
            _full_spec(1, 3 * E),
            _full_spec(num_heads, E),
            _full_spec(S * B, S * B),
            _full_spec(1, 1),
        ],
        out_specs=_full_spec(S * B, 1),
        scratch_shapes=[pltpu.VMEM((S * B, E), jnp.float32)],
        compiler_params=pltpu.CompilerParams(dimension_semantics=("arbitrary",)),
    )(x_pair, h0c, w_in_blk, b_in, whh_blk, bhn,
      wqkv, bqkv, w_vfold, attn_bias, bcomb)

    # time-major (t*B+b, 1) -> (B, S, 1): wrapper-side layout plumbing only.
    return jnp.transpose(out_tm.reshape(S, B, 1), (1, 0, 2))


# ----------------------------------------------------------------------------
# Pure-JAX reference (same math, no Pallas) for verification
# ----------------------------------------------------------------------------
def reference(bert_x, h0, prm, num_heads):
    B, S, _ = bert_x.shape

    def gru_dir(x, h, wih, whh, bih, bhh):
        H = h.shape[-1]
        outs = []
        for t in range(x.shape[1]):
            xt = x[:, t]
            gi = xt @ wih.T + bih
            gh = h @ whh.T + bhh
            r = jax.nn.sigmoid(gi[:, :H] + gh[:, :H])
            z = jax.nn.sigmoid(gi[:, H:2 * H] + gh[:, H:2 * H])
            n = jnp.tanh(gi[:, 2 * H:] + r * gh[:, 2 * H:])
            h = (1.0 - z) * n + z * h
            outs.append(h)
        return jnp.stack(outs, axis=1)

    of = gru_dir(bert_x, h0[0], *prm["gru_fwd"])
    ob = gru_dir(bert_x[:, ::-1], h0[1], *prm["gru_bwd"])[:, ::-1]
    rnn = jnp.concatenate([of, ob], axis=-1)                      # (B, S, E)

    wq, wk, wv, bq, bk, bv, wo, bo = prm["mha"]
    E = rnn.shape[-1]
    hd = E // num_heads
    q = rnn @ wq.T + bq
    k = rnn @ wk.T + bk
    v = rnn @ wv.T + bv

    def split(a):
        return a.reshape(B, S, num_heads, hd).transpose(0, 2, 1, 3)

    qh, kh, vh = split(q), split(k), split(v)
    s = jnp.einsum("bhqd,bhkd->bhqk", qh, kh) / math.sqrt(hd)
    p = jax.nn.softmax(s, axis=-1)
    o = jnp.einsum("bhqk,bhkd->bhqd", p, vh).transpose(0, 2, 1, 3).reshape(B, S, E)
    attn = o @ wo.T + bo
    return attn @ prm["fc_w"].T + prm["fc_b"]


if __name__ == "__main__":
    # Small, forward-consistent shapes
    B, S = 2, 8            # bs, inplen
    I = 32                 # inpsize (stand-in for roberta hidden size)
    H = 32                 # hs
    NL = 1                 # num_layer
    NH = 4                 # natth
    BD = 2                 # bidirectional
    E = BD * H             # attn_dim = 64

    key = jax.random.PRNGKey(0)
    ks = jax.random.split(key, 16)

    def unif(k, shape, fan_in):
        bound = 1.0 / math.sqrt(fan_in)
        return jax.random.uniform(k, shape, jnp.float32, -bound, bound)

    # synthetic BERT encoder output + deterministic h0 (forward uses torch.randn)
    bert_x = jax.random.normal(ks[0], (B, S, I), jnp.float32)
    h0 = jax.random.normal(ks[1], (BD * NL, B, H), jnp.float32)

    prm = {
        "gru_fwd": (unif(ks[2], (3 * H, I), H), unif(ks[3], (3 * H, H), H),
                    unif(ks[4], (3 * H,), H), unif(ks[5], (3 * H,), H)),
        "gru_bwd": (unif(ks[6], (3 * H, I), H), unif(ks[7], (3 * H, H), H),
                    unif(ks[8], (3 * H,), H), unif(ks[9], (3 * H,), H)),
        "mha": (unif(ks[10], (E, E), E), unif(ks[11], (E, E), E),
                unif(ks[12], (E, E), E),
                unif(ks[13], (E,), E), unif(ks[13], (E,), E), unif(ks[13], (E,), E),
                unif(ks[14], (E, E), E), unif(ks[14], (E,), E)),
        "fc_w": unif(ks[15], (1, E), E),
        "fc_b": unif(ks[15], (1,), E),
    }

    out = bertner_forward(bert_x, h0, prm, num_heads=NH)
    out = jax.block_until_ready(out)
    assert out.shape == (B, S, 1), out.shape

    ref = jax.block_until_ready(reference(bert_x, h0, prm, NH))
    np.testing.assert_allclose(np.asarray(out), np.asarray(ref),
                               rtol=2e-2, atol=5e-3)

    print("KERNEL_OK")
</pallas_src>

<mosaic_0001>
module attributes {stable_mosaic.version = 11 : i64} {
  func.func @fused_bertner_kernel(%arg0: i32, %arg1: memref<16x64xf32, #tpu.memory_space<vmem>>, %arg2: memref<2x64xf32, #tpu.memory_space<vmem>>, %arg3: memref<64x192xf32, #tpu.memory_space<vmem>>, %arg4: memref<1x192xf32, #tpu.memory_space<vmem>>, %arg5: memref<64x192xf32, #tpu.memory_space<vmem>>, %arg6: memref<1x64xf32, #tpu.memory_space<vmem>>, %arg7: memref<64x192xf32, #tpu.memory_space<vmem>>, %arg8: memref<1x192xf32, #tpu.memory_space<vmem>>, %arg9: memref<4x64xf32, #tpu.memory_space<vmem>>, %arg10: memref<16x16xf32, #tpu.memory_space<vmem>>, %arg11: memref<1x1xf32, #tpu.memory_space<vmem>>, %arg12: memref<16x1xf32, #tpu.memory_space<vmem>>, %arg13: memref<16x64xf32, #tpu.memory_space<vmem>>) attributes {dimension_semantics = [#tpu.dimension_semantics<arbitrary>], iteration_bounds = array<i64: 1>, scalar_prefetch = 0 : i64, scratch_operands = 1 : i64, tpu.core_type = #tpu.core_type<tc>, window_params = [{pipeline_mode = #tpu.pipeline_mode<synchronous>, transform_indices = @transform_0, window_bounds = array<i64: 16, 64>}, {pipeline_mode = #tpu.pipeline_mode<synchronous>, transform_indices = @transform_1, window_bounds = array<i64: 2, 64>}, {pipeline_mode = #tpu.pipeline_mode<synchronous>, transform_indices = @transform_2, window_bounds = array<i64: 64, 192>}, {pipeline_mode = #tpu.pipeline_mode<synchronous>, transform_indices = @transform_3, window_bounds = array<i64: 1, 192>}, {pipeline_mode = #tpu.pipeline_mode<synchronous>, transform_indices = @transform_4, window_bounds = array<i64: 64, 192>}, {pipeline_mode = #tpu.pipeline_mode<synchronous>, transform_indices = @transform_5, window_bounds = array<i64: 1, 64>}, {pipeline_mode = #tpu.pipeline_mode<synchronous>, transform_indices = @transform_6, window_bounds = array<i64: 64, 192>}, {pipeline_mode = #tpu.pipeline_mode<synchronous>, transform_indices = @transform_7, window_bounds = array<i64: 1, 192>}, {pipeline_mode = #tpu.pipeline_mode<synchronous>, transform_indices = @transform_8, window_bounds = array<i64: 4, 64>}, {pipeline_mode = #tpu.pipeline_mode<synchronous>, transform_indices = @transform_9, window_bounds = array<i64: 16, 16>}, {pipeline_mode = #tpu.pipeline_mode<synchronous>, transform_indices = @transform_10, window_bounds = array<i64: 1, 1>}, {pipeline_mode = #tpu.pipeline_mode<synchronous>, transform_indices = @transform_11, window_bounds = array<i64: 16, 1>}]} {
    %c0 = arith.constant 0 : index
    %c0_0 = arith.constant 0 : index
    %0 = vector.load %arg1[%c0, %c0_0] : memref<16x64xf32, #tpu.memory_space<vmem>>, vector<16x64xf32>
    %c0_1 = arith.constant 0 : index
    %c0_2 = arith.constant 0 : index
    %1 = vector.load %arg3[%c0_1, %c0_2] : memref<64x192xf32, #tpu.memory_space<vmem>>, vector<64x192xf32>
    %cst = arith.constant dense<0.000000e+00> : vector<16x192xf32>
    %2 = tpu.matmul %0, %1, %cst {dimension_numbers = #tpu.dot_dimension_numbers<[1], [0], [0], [1], [0, 0, 1, 1], [], []>} : vector<16x64xf32>, vector<64x192xf32>, vector<16x192xf32> -> vector<16x192xf32>
    %c0_3 = arith.constant 0 : index
    %c0_4 = arith.constant 0 : index
    %3 = vector.load %arg4[%c0_3, %c0_4] : memref<1x192xf32, #tpu.memory_space<vmem>>, vector<1x192xf32>
    %4 = vector.broadcast %3 : vector<1x192xf32> to vector<16x192xf32>
    %5 = arith.addf %2, %4 : vector<16x192xf32>
    %c0_5 = arith.constant 0 : index
    %c0_6 = arith.constant 0 : index
    %6 = vector.load %arg5[%c0_5, %c0_6] : memref<64x192xf32, #tpu.memory_space<vmem>>, vector<64x192xf32>
    %c0_7 = arith.constant 0 : index
    %c0_8 = arith.constant 0 : index
    %7 = vector.load %arg6[%c0_7, %c0_8] : memref<1x64xf32, #tpu.memory_space<vmem>>, vector<1x64xf32>
    %8 = vector.shape_cast %7 : vector<1x64xf32> to vector<1x64xf32>
    %9 = vector.broadcast %8 : vector<1x64xf32> to vector<2x64xf32>
    %c0_9 = arith.constant 0 : index
    %c0_10 = arith.constant 0 : index
    %10 = vector.load %arg2[%c0_9, %c0_10] : memref<2x64xf32, #tpu.memory_space<vmem>>, vector<2x64xf32>
    %11 = vector.extract_strided_slice %5 {offsets = [0, 0], sizes = [2, 192], strides = [1, 1]} : vector<16x192xf32> to vector<2x192xf32>
    %cst_11 = arith.constant dense<0.000000e+00> : vector<2x192xf32>
    %12 = tpu.matmul %10, %6, %cst_11 {dimension_numbers = #tpu.dot_dimension_numbers<[1], [0], [0], [1], [0, 0, 1, 1], [], []>} : vector<2x64xf32>, vector<64x192xf32>, vector<2x192xf32> -> vector<2x192xf32>
    %13 = vector.extract_strided_slice %11 {offsets = [0, 0], sizes = [2, 128], strides = [1, 1]} : vector<2x192xf32> to vector<2x128xf32>
    %14 = vector.extract_strided_slice %12 {offsets = [0, 0], sizes = [2, 128], strides = [1, 1]} : vector<2x192xf32> to vector<2x128xf32>
    %15 = arith.addf %13, %14 : vector<2x128xf32>
    %cst_12 = arith.constant 5.000000e-01 : f32
    %16 = vector.broadcast %cst_12 : f32 to vector<2x128xf32>
    %17 = arith.mulf %16, %15 : vector<2x128xf32>
    %18 = math.tanh %17 : vector<2x128xf32>
    %cst_13 = arith.constant 1.000000e+00 : f32
    %19 = vector.broadcast %cst_13 : f32 to vector<2x128xf32>
    %20 = arith.addf %18, %19 : vector<2x128xf32>
    %cst_14 = arith.constant 5.000000e-01 : f32
    %21 = vector.broadcast %cst_14 : f32 to vector<2x128xf32>
    %22 = arith.mulf %21, %20 : vector<2x128xf32>
    %23 = vector.extract_strided_slice %22 {offsets = [0, 0], sizes = [2, 64], strides = [1, 1]} : vector<2x128xf32> to vector<2x64xf32>
    %24 = vector.extract_strided_slice %22 {offsets = [0, 64], sizes = [2, 64], strides = [1, 1]} : vector<2x128xf32> to vector<2x64xf32>
    %25 = vector.extract_strided_slice %11 {offsets = [0, 128], sizes = [2, 64], strides = [1, 1]} : vector<2x192xf32> to vector<2x64xf32>
    %26 = vector.extract_strided_slice %12 {offsets = [0, 128], sizes = [2, 64], strides = [1, 1]} : vector<2x192xf32> to vector<2x64xf32>
    %27 = arith.addf %26, %9 : vector<2x64xf32>
    %28 = arith.mulf %23, %27 : vector<2x64xf32>
    %29 = arith.addf %25, %28 : vector<2x64xf32>
    %30 = math.tanh %29 : vector<2x64xf32>
    %cst_15 = arith.constant 1.000000e+00 : f32
    %31 = vector.broadcast %cst_15 : f32 to vector<2x64xf32>
    %32 = arith.subf %31, %24 : vector<2x64xf32>
    %33 = arith.mulf %32, %30 : vector<2x64xf32>
    %34 = arith.mulf %24, %10 : vector<2x64xf32>
    %35 = arith.addf %33, %34 : vector<2x64xf32>
    %36 = vector.extract_strided_slice %35 {offsets = [0, 0], sizes = [2, 32], strides = [1, 1]} : vector<2x64xf32> to vector<2x32xf32>
    %c0_16 = arith.constant 0 : index
    %c0_17 = arith.constant 0 : index
    %37 = vector.load %arg13[%c0_16, %c0_17] : memref<16x64xf32, #tpu.memory_space<vmem>>, vector<2x32xf32>
    tpu.vector_store %arg13[%c0_16, %c0_17], %36 {strides = array<i32>} : memref<16x64xf32, #tpu.memory_space<vmem>>, vector<2x32xf32>,
    %38 = vector.extract_strided_slice %35 {offsets = [0, 32], sizes = [2, 32], strides = [1, 1]} : vector<2x64xf32> to vector<2x32xf32>
    %c14 = arith.constant 14 : index
    %c32 = arith.constant 32 : index
    %39 = vector.load %arg13[%c14, %c32] : memref<16x64xf32, #tpu.memory_space<vmem>>, vector<2x32xf32>
    tpu.vector_store %arg13[%c14, %c32], %38 {strides = array<i32>} : memref<16x64xf32, #tpu.memory_space<vmem>>, vector<2x32xf32>,
    %40 = vector.extract_strided_slice %5 {offsets = [2, 0], sizes = [2, 192], strides = [1, 1]} : vector<16x192xf32> to vector<2x192xf32>
    %cst_18 = arith.constant dense<0.000000e+00> : vector<2x192xf32>
    %41 = tpu.matmul %35, %6, %cst_18 {dimension_numbers = #tpu.dot_dimension_numbers<[1], [0], [0], [1], [0, 0, 1, 1], [], []>} : vector<2x64xf32>, vector<64x192xf32>, vector<2x192xf32> -> vector<2x192xf32>
    %42 = vector.extract_strided_slice %40 {offsets = [0, 0], sizes = [2, 128], strides = [1, 1]} : vector<2x192xf32> to vector<2x128xf32>
    %43 = vector.extract_strided_slice %41 {offsets = [0, 0], sizes = [2, 128], strides = [1, 1]} : vector<2x192xf32> to vector<2x128xf32>
    %44 = arith.addf %42, %43 : vector<2x128xf32>
    %cst_19 = arith.constant 5.000000e-01 : f32
    %45 = vector.broadcast %cst_19 : f32 to vector<2x128xf32>
    %46 = arith.mulf %45, %44 : vector<2x128xf32>
    %47 = math.tanh %46 : vector<2x128xf32>
    %cst_20 = arith.constant 1.000000e+00 : f32
    %48 = vector.broadcast %cst_20 : f32 to vector<2x128xf32>
    %49 = arith.addf %47, %48 : vector<2x128xf32>
    %cst_21 = arith.constant 5.000000e-01 : f32
    %50 = vector.broadcast %cst_21 : f32 to vector<2x128xf32>
    %51 = arith.mulf %50, %49 : vector<2x128xf32>
    %52 = vector.extract_strided_slice %51 {offsets = [0, 0], sizes = [2, 64], strides = [1, 1]} : vector<2x128xf32> to vector<2x64xf32>
    %53 = vector.extract_strided_slice %51 {offsets = [0, 64], sizes = [2, 64], strides = [1, 1]} : vector<2x128xf32> to vector<2x64xf32>
    %54 = vector.extract_strided_slice %40 {offsets = [0, 128], sizes = [2, 64], strides = [1, 1]} : vector<2x192xf32> to vector<2x64xf32>
    %55 = vector.extract_strided_slice %41 {offsets = [0, 128], sizes = [2, 64], strides = [1, 1]} : vector<2x192xf32> to vector<2x64xf32>
    %56 = arith.addf %55, %9 : vector<2x64xf32>
    %57 = arith.mulf %52, %56 : vector<2x64xf32>
    %58 = arith.addf %54, %57 : vector<2x64xf32>
    %59 = math.tanh %58 : vector<2x64xf32>
    %cst_22 = arith.constant 1.000000e+00 : f32
    %60 = vector.broadcast %cst_22 : f32 to vector<2x64xf32>
    %61 = arith.subf %60, %53 : vector<2x64xf32>
    %62 = arith.mulf %61, %59 : vector<2x64xf32>
    %63 = arith.mulf %53, %35 : vector<2x64xf32>
    %64 = arith.addf %62, %63 : vector<2x64xf32>
    %65 = vector.extract_strided_slice %64 {offsets = [0, 0], sizes = [2, 32], strides = [1, 1]} : vector<2x64xf32> to vector<2x32xf32>
    %c2 = arith.constant 2 : index
    %c0_23 = arith.constant 0 : index
    %66 = vector.load %arg13[%c2, %c0_23] : memref<16x64xf32, #tpu.memory_space<vmem>>, vector<2x32xf32>
    tpu.vector_store %arg13[%c2, %c0_23], %65 {strides = array<i32>} : memref<16x64xf32, #tpu.memory_space<vmem>>, vector<2x32xf32>,
    %67 = vector.extract_strided_slice %64 {offsets = [0, 32], sizes = [2, 32], strides = [1, 1]} : vector<2x64xf32> to vector<2x32xf32>
    %c12 = arith.constant 12 : index
    %c32_24 = arith.constant 32 : index
    %68 = vector.load %arg13[%c12, %c32_24] : memref<16x64xf32, #tpu.memory_space<vmem>>, vector<2x32xf32>
    tpu.vector_store %arg13[%c12, %c32_24], %67 {strides = array<i32>} : memref<16x64xf32, #tpu.memory_space<vmem>>, vector<2x32xf32>,
    %69 = vector.extract_strided_slice %5 {offsets = [4, 0], sizes = [2, 192], strides = [1, 1]} : vector<16x192xf32> to vector<2x192xf32>
    %cst_25 = arith.constant dense<0.000000e+00> : vector<2x192xf32>
    %70 = tpu.matmul %64, %6, %cst_25 {dimension_numbers = #tpu.dot_dimension_numbers<[1], [0], [0], [1], [0, 0, 1, 1], [], []>} : vector<2x64xf32>, vector<64x192xf32>, vector<2x192xf32> -> vector<2x192xf32>
    %71 = vector.extract_strided_slice %69 {offsets = [0, 0], sizes = [2, 128], strides = [1, 1]} : vector<2x192xf32> to vector<2x128xf32>
    %72 = vector.extract_strided_slice %70 {offsets = [0, 0], sizes = [2, 128], strides = [1, 1]} : vector<2x192xf32> to vector<2x128xf32>
    %73 = arith.addf %71, %72 : vector<2x128xf32>
    %cst_26 = arith.constant 5.000000e-01 : f32
    %74 = vector.broadcast %cst_26 : f32 to vector<2x128xf32>
    %75 = arith.mulf %74, %73 : vector<2x128xf32>
    %76 = math.tanh %75 : vector<2x128xf32>
    %cst_27 = arith.constant 1.000000e+00 : f32
    %77 = vector.broadcast %cst_27 : f32 to vector<2x128xf32>
    %78 = arith.addf %76, %77 : vector<2x128xf32>
    %cst_28 = arith.constant 5.000000e-01 : f32
    %79 = vector.broadcast %cst_28 : f32 to vector<2x128xf32>
    %80 = arith.mulf %79, %78 : vector<2x128xf32>
    %81 = vector.extract_strided_slice %80 {offsets = [0, 0], sizes = [2, 64], strides = [1, 1]} : vector<2x128xf32> to vector<2x64xf32>
    %82 = vector.extract_strided_slice %80 {offsets = [0, 64], sizes = [2, 64], strides = [1, 1]} : vector<2x128xf32> to vector<2x64xf32>
    %83 = vector.extract_strided_slice %69 {offsets = [0, 128], sizes = [2, 64], strides = [1, 1]} : vector<2x192xf32> to vector<2x64xf32>
    %84 = vector.extract_strided_slice %70 {offsets = [0, 128], sizes = [2, 64], strides = [1, 1]} : vector<2x192xf32> to vector<2x64xf32>
    %85 = arith.addf %84, %9 : vector<2x64xf32>
    %86 = arith.mulf %81, %85 : vector<2x64xf32>
    %87 = arith.addf %83, %86 : vector<2x64xf32>
    %88 = math.tanh %87 : vector<2x64xf32>
    %cst_29 = arith.constant 1.000000e+00 : f32
    %89 = vector.broadcast %cst_29 : f32 to vector<2x64xf32>
    %90 = arith.subf %89, %82 : vector<2x64xf32>
    %91 = arith.mulf %90, %88 : vector<2x64xf32>
    %92 = arith.mulf %82, %64 : vector<2x64xf32>
    %93 = arith.addf %91, %92 : vector<2x64xf32>
    %94 = vector.extract_strided_slice %93 {offsets = [0, 0], sizes = [2, 32], strides = [1, 1]} : vector<2x64xf32> to vector<2x32xf32>
    %c4 = arith.constant 4 : index
    %c0_30 = arith.constant 0 : index
    %95 = vector.load %arg13[%c4, %c0_30] : memref<16x64xf32, #tpu.memory_space<vmem>>, vector<2x32xf32>
    tpu.vector_store %arg13[%c4, %c0_30], %94 {strides = array<i32>} : memref<16x64xf32, #tpu.memory_space<vmem>>, vector<2x32xf32>,
    %96 = vector.extract_strided_slice %93 {offsets = [0, 32], sizes = [2, 32], strides = [1, 1]} : vector<2x64xf32> to vector<2x32xf32>
    %c10 = arith.constant 10 : index
    %c32_31 = arith.constant 32 : index
    %97 = vector.load %arg13[%c10, %c32_31] : memref<16x64xf32, #tpu.memory_space<vmem>>, vector<2x32xf32>
    tpu.vector_store %arg13[%c10, %c32_31], %96 {strides = array<i32>} : memref<16x64xf32, #tpu.memory_space<vmem>>, vector<2x32xf32>,
    %98 = vector.extract_strided_slice %5 {offsets = [6, 0], sizes = [2, 192], strides = [1, 1]} : vector<16x192xf32> to vector<2x192xf32>
    %cst_32 = arith.constant dense<0.000000e+00> : vector<2x192xf32>
    %99 = tpu.matmul %93, %6, %cst_32 {dimension_numbers = #tpu.dot_dimension_numbers<[1], [0], [0], [1], [0, 0, 1, 1], [], []>} : vector<2x64xf32>, vector<64x192xf32>, vector<2x192xf32> -> vector<2x192xf32>
    %100 = vector.extract_strided_slice %98 {offsets = [0, 0], sizes = [2, 128], strides = [1, 1]} : vector<2x192xf32> to vector<2x128xf32>
    %101 = vector.extract_strided_slice %99 {offsets = [0, 0], sizes = [2, 128], strides = [1, 1]} : vector<2x192xf32> to vector<2x128xf32>
    %102 = arith.addf %100, %101 : vector<2x128xf32>
    %cst_33 = arith.constant 5.000000e-01 : f32
    %103 = vector.broadcast %cst_33 : f32 to vector<2x128xf32>
    %104 = arith.mulf %103, %102 : vector<2x128xf32>
    %105 = math.tanh %104 : vector<2x128xf32>
    %cst_34 = arith.constant 1.000000e+00 : f32
    %106 = vector.broadcast %cst_34 : f32 to vector<2x128xf32>
    %107 = arith.addf %105, %106 : vector<2x128xf32>
    %cst_35 = arith.constant 5.000000e-01 : f32
    %108 = vector.broadcast %cst_35 : f32 to vector<2x128xf32>
    %109 = arith.mulf %108, %107 : vector<2x128xf32>
    %110 = vector.extract_strided_slice %109 {offsets = [0, 0], sizes = [2, 64], strides = [1, 1]} : vector<2x128xf32> to vector<2x64xf32>
    %111 = vector.extract_strided_slice %109 {offsets = [0, 64], sizes = [2, 64], strides = [1, 1]} : vector<2x128xf32> to vector<2x64xf32>
    %112 = vector.extract_strided_slice %98 {offsets = [0, 128], sizes = [2, 64], strides = [1, 1]} : vector<2x192xf32> to vector<2x64xf32>
    %113 = vector.extract_strided_slice %99 {offsets = [0, 128], sizes = [2, 64], strides = [1, 1]} : vector<2x192xf32> to vector<2x64xf32>
    %114 = arith.addf %113, %9 : vector<2x64xf32>
    %115 = arith.mulf %110, %114 : vector<2x64xf32>
    %116 = arith.addf %112, %115 : vector<2x64xf32>
    %117 = math.tanh %116 : vector<2x64xf32>
    %cst_36 = arith.constant 1.000000e+00 : f32
    %118 = vector.broadcast %cst_36 : f32 to vector<2x64xf32>
    %119 = arith.subf %118, %111 : vector<2x64xf32>
    %120 = arith.mulf %119, %117 : vector<2x64xf32>
    %121 = arith.mulf %111, %93 : vector<2x64xf32>
    %122 = arith.addf %120, %121 : vector<2x64xf32>
    %123 = vector.extract_strided_slice %122 {offsets = [0, 0], sizes = [2, 32], strides = [1, 1]} : vector<2x64xf32> to vector<2x32xf32>
    %c6 = arith.constant 6 : index
    %c0_37 = arith.constant 0 : index
    %124 = vector.load %arg13[%c6, %c0_37] : memref<16x64xf32, #tpu.memory_space<vmem>>, vector<2x32xf32>
    tpu.vector_store %arg13[%c6, %c0_37], %123 {strides = array<i32>} : memref<16x64xf32, #tpu.memory_space<vmem>>, vector<2x32xf32>,
    %125 = vector.extract_strided_slice %122 {offsets = [0, 32], sizes = [2, 32], strides = [1, 1]} : vector<2x64xf32> to vector<2x32xf32>
    %c8 = arith.constant 8 : index
    %c32_38 = arith.constant 32 : index
    %126 = vector.load %arg13[%c8, %c32_38] : memref<16x64xf32, #tpu.memory_space<vmem>>, vector<2x32xf32>
    tpu.vector_store %arg13[%c8, %c32_38], %125 {strides = array<i32>} : memref<16x64xf32, #tpu.memory_space<vmem>>, vector<2x32xf32>,
    %127 = vector.extract_strided_slice %5 {offsets = [8, 0], sizes = [2, 192], strides = [1, 1]} : vector<16x192xf32> to vector<2x192xf32>
    %cst_39 = arith.constant dense<0.000000e+00> : vector<2x192xf32>
    %128 = tpu.matmul %122, %6, %cst_39 {dimension_numbers = #tpu.dot_dimension_numbers<[1], [0], [0], [1], [0, 0, 1, 1], [], []>} : vector<2x64xf32>, vector<64x192xf32>, vector<2x192xf32> -> vector<2x192xf32>
    %129 = vector.extract_strided_slice %127 {offsets = [0, 0], sizes = [2, 128], strides = [1, 1]} : vector<2x192xf32> to vector<2x128xf32>
    %130 = vector.extract_strided_slice %128 {offsets = [0, 0], sizes = [2, 128], strides = [1, 1]} : vector<2x192xf32> to vector<2x128xf32>
    %131 = arith.addf %129, %130 : vector<2x128xf32>
    %cst_40 = arith.constant 5.000000e-01 : f32
    %132 = vector.broadcast %cst_40 : f32 to vector<2x128xf32>
    %133 = arith.mulf %132, %131 : vector<2x128xf32>
    %134 = math.tanh %133 : vector<2x128xf32>
    %cst_41 = arith.constant 1.000000e+00 : f32
    %135 = vector.broadcast %cst_41 : f32 to vector<2x128xf32>
    %136 = arith.addf %134, %135 : vector<2x128xf32>
    %cst_42 = arith.constant 5.000000e-01 : f32
    %137 = vector.broadcast %cst_42 : f32 to vector<2x128xf32>
    %138 = arith.mulf %137, %136 : vector<2x128xf32>
    %139 = vector.extract_strided_slice %138 {offsets = [0, 0], sizes = [2, 64], strides = [1, 1]} : vector<2x128xf32> to vector<2x64xf32>
    %140 = vector.extract_strided_slice %138 {offsets = [0, 64], sizes = [2, 64], strides = [1, 1]} : vector<2x128xf32> to vector<2x64xf32>
    %141 = vector.extract_strided_slice %127 {offsets = [0, 128], sizes = [2, 64], strides = [1, 1]} : vector<2x192xf32> to vector<2x64xf32>
    %142 = vector.extract_strided_slice %128 {offsets = [0, 128], sizes = [2, 64], strides = [1, 1]} : vector<2x192xf32> to vector<2x64xf32>
    %143 = arith.addf %142, %9 : vector<2x64xf32>
    %144 = arith.mulf %139, %143 : vector<2x64xf32>
    %145 = arith.addf %141, %144 : vector<2x64xf32>
    %146 = math.tanh %145 : vector<2x64xf32>
    %cst_43 = arith.constant 1.000000e+00 : f32
    %147 = vector.broadcast %cst_43 : f32 to vector<2x64xf32>
    %148 = arith.subf %147, %140 : vector<2x64xf32>
    %149 = arith.mulf %148, %146 : vector<2x64xf32>
    %150 = arith.mulf %140, %122 : vector<2x64xf32>
    %151 = arith.addf %149, %150 : vector<2x64xf32>
    %152 = vector.extract_strided_slice %151 {offsets = [0, 0], sizes = [2, 32], strides = [1, 1]} : vector<2x64xf32> to vector<2x32xf32>
    %c8_44 = arith.constant 8 : index
    %c0_45 = arith.constant 0 : index
    %153 = vector.load %arg13[%c8_44, %c0_45] : memref<16x64xf32, #tpu.memory_space<vmem>>, vector<2x32xf32>
    tpu.vector_store %arg13[%c8_44, %c0_45], %152 {strides = array<i32>} : memref<16x64xf32, #tpu.memory_space<vmem>>, vector<2x32xf32>,
    %154 = vector.extract_strided_slice %151 {offsets = [0, 32], sizes = [2, 32], strides = [1, 1]} : vector<2x64xf32> to vector<2x32xf32>
    %c6_46 = arith.constant 6 : index
    %c32_47 = arith.constant 32 : index
    %155 = vector.load %arg13[%c6_46, %c32_47] : memref<16x64xf32, #tpu.memory_space<vmem>>, vector<2x32xf32>
    tpu.vector_store %arg13[%c6_46, %c32_47], %154 {strides = array<i32>} : memref<16x64xf32, #tpu.memory_space<vmem>>, vector<2x32xf32>,
    %156 = vector.extract_strided_slice %5 {offsets = [10, 0], sizes = [2, 192], strides = [1, 1]} : vector<16x192xf32> to vector<2x192xf32>
    %cst_48 = arith.constant dense<0.000000e+00> : vector<2x192xf32>
    %157 = tpu.matmul %151, %6, %cst_48 {dimension_numbers = #tpu.dot_dimension_numbers<[1], [0], [0], [1], [0, 0, 1, 1], [], []>} : vector<2x64xf32>, vector<64x192xf32>, vector<2x192xf32> -> vector<2x192xf32>
    %158 = vector.extract_strided_slice %156 {offsets = [0, 0], sizes = [2, 128], strides = [1, 1]} : vector<2x192xf32> to vector<2x128xf32>
    %159 = vector.extract_strided_slice %157 {offsets = [0, 0], sizes = [2, 128], strides = [1, 1]} : vector<2x192xf32> to vector<2x128xf32>
    %160 = arith.addf %158, %159 : vector<2x128xf32>
    %cst_49 = arith.constant 5.000000e-01 : f32
    %161 = vector.broadcast %cst_49 : f32 to vector<2x128xf32>
    %162 = arith.mulf %161, %160 : vector<2x128xf32>
    %163 = math.tanh %162 : vector<2x128xf32>
    %cst_50 = arith.constant 1.000000e+00 : f32
    %164 = vector.broadcast %cst_50 : f32 to vector<2x128xf32>
    %165 = arith.addf %163, %164 : vector<2x128xf32>
    %cst_51 = arith.constant 5.000000e-01 : f32
    %166 = vector.broadcast %cst_51 : f32 to vector<2x128xf32>
    %167 = arith.mulf %166, %165 : vector<2x128xf32>
    %168 = vector.extract_strided_slice %167 {offsets = [0, 0], sizes = [2, 64], strides = [1, 1]} : vector<2x128xf32> to vector<2x64xf32>
    %169 = vector.extract_strided_slice %167 {offsets = [0, 64], sizes = [2, 64], strides = [1, 1]} : vector<2x128xf32> to vector<2x64xf32>
    %170 = vector.extract_strided_slice %156 {offsets = [0, 128], sizes = [2, 64], strides = [1, 1]} : vector<2x192xf32> to vector<2x64xf32>
    %171 = vector.extract_strided_slice %157 {offsets = [0, 128], sizes = [2, 64], strides = [1, 1]} : vector<2x192xf32> to vector<2x64xf32>
    %172 = arith.addf %171, %9 : vector<2x64xf32>
    %173 = arith.mulf %168, %172 : vector<2x64xf32>
    %174 = arith.addf %170, %173 : vector<2x64xf32>
    %175 = math.tanh %174 : vector<2x64xf32>
    %cst_52 = arith.constant 1.000000e+00 : f32
    %176 = vector.broadcast %cst_52 : f32 to vector<2x64xf32>
    %177 = arith.subf %176, %169 : vector<2x64xf32>
    %178 = arith.mulf %177, %175 : vector<2x64xf32>
    %179 = arith.mulf %169, %151 : vector<2x64xf32>
    %180 = arith.addf %178, %179 : vector<2x64xf32>
    %181 = vector.extract_strided_slice %180 {offsets = [0, 0], sizes = [2, 32], strides = [1, 1]} : vector<2x64xf32> to vector<2x32xf32>
    %c10_53 = arith.constant 10 : index
    %c0_54 = arith.constant 0 : index
    %182 = vector.load %arg13[%c10_53, %c0_54] : memref<16x64xf32, #tpu.memory_space<vmem>>, vector<2x32xf32>
    tpu.vector_store %arg13[%c10_53, %c0_54], %181 {strides = array<i32>} : memref<16x64xf32, #tpu.memory_space<vmem>>, vector<2x32xf32>,
    %183 = vector.extract_strided_slice %180 {offsets = [0, 32], sizes = [2, 32], strides = [1, 1]} : vector<2x64xf32> to vector<2x32xf32>
    %c4_55 = arith.constant 4 : index
    %c32_56 = arith.constant 32 : index
    %184 = vector.load %arg13[%c4_55, %c32_56] : memref<16x64xf32, #tpu.memory_space<vmem>>, vector<2x32xf32>
    tpu.vector_store %arg13[%c4_55, %c32_56], %183 {strides = array<i32>} : memref<16x64xf32, #tpu.memory_space<vmem>>, vector<2x32xf32>,
    %185 = vector.extract_strided_slice %5 {offsets = [12, 0], sizes = [2, 192], strides = [1, 1]} : vector<16x192xf32> to vector<2x192xf32>
    %cst_57 = arith.constant dense<0.000000e+00> : vector<2x192xf32>
    %186 = tpu.matmul %180, %6, %cst_57 {dimension_numbers = #tpu.dot_dimension_numbers<[1], [0], [0], [1], [0, 0, 1, 1], [], []>} : vector<2x64xf32>, vector<64x192xf32>, vector<2x192xf32> -> vector<2x192xf32>
    %187 = vector.extract_strided_slice %185 {offsets = [0, 0], sizes = [2, 128], strides = [1, 1]} : vector<2x192xf32> to vector<2x128xf32>
    %188 = vector.extract_strided_slice %186 {offsets = [0, 0], sizes = [2, 128], strides = [1, 1]} : vector<2x192xf32> to vector<2x128xf32>
    %189 = arith.addf %187, %188 : vector<2x128xf32>
    %cst_58 = arith.constant 5.000000e-01 : f32
    %190 = vector.broadcast %cst_58 : f32 to vector<2x128xf32>
    %191 = arith.mulf %190, %189 : vector<2x128xf32>
    %192 = math.tanh %191 : vector<2x128xf32>
    %cst_59 = arith.constant 1.000000e+00 : f32
    %193 = vector.broadcast %cst_59 : f32 to vector<2x128xf32>
    %194 = arith.addf %192, %193 : vector<2x128xf32>
    %cst_60 = arith.constant 5.000000e-01 : f32
    %195 = vector.broadcast %cst_60 : f32 to vector<2x128xf32>
    %196 = arith.mulf %195, %194 : vector<2x128xf32>
    %197 = vector.extract_strided_slice %196 {offsets = [0, 0], sizes = [2, 64], strides = [1, 1]} : vector<2x128xf32> to vector<2x64xf32>
    %198 = vector.extract_strided_slice %196 {offsets = [0, 64], sizes = [2, 64], strides = [1, 1]} : vector<2x128xf32> to vector<2x64xf32>
    %199 = vector.extract_strided_slice %185 {offsets = [0, 128], sizes = [2, 64], strides = [1, 1]} : vector<2x192xf32> to vector<2x64xf32>
    %200 = vector.extract_strided_slice %186 {offsets = [0, 128], sizes = [2, 64], strides = [1, 1]} : vector<2x192xf32> to vector<2x64xf32>
    %201 = arith.addf %200, %9 : vector<2x64xf32>
    %202 = arith.mulf %197, %201 : vector<2x64xf32>
    %203 = arith.addf %199, %202 : vector<2x64xf32>
    %204 = math.tanh %203 : vector<2x64xf32>
    %cst_61 = arith.constant 1.000000e+00 : f32
    %205 = vector.broadcast %cst_61 : f32 to vector<2x64xf32>
    %206 = arith.subf %205, %198 : vector<2x64xf32>
    %207 = arith.mulf %206, %204 : vector<2x64xf32>
    %208 = arith.mulf %198, %180 : vector<2x64xf32>
    %209 = arith.addf %207, %208 : vector<2x64xf32>
    %210 = vector.extract_strided_slice %209 {offsets = [0, 0], sizes = [2, 32], strides = [1, 1]} : vector<2x64xf32> to vector<2x32xf32>
    %c12_62 = arith.constant 12 : index
    %c0_63 = arith.constant 0 : index
    %211 = vector.load %arg13[%c12_62, %c0_63] : memref<16x64xf32, #tpu.memory_space<vmem>>, vector<2x32xf32>
    tpu.vector_store %arg13[%c12_62, %c0_63], %210 {strides = array<i32>} : memref<16x64xf32, #tpu.memory_space<vmem>>, vector<2x32xf32>,
    %212 = vector.extract_strided_slice %209 {offsets = [0, 32], sizes = [2, 32], strides = [1, 1]} : vector<2x64xf32> to vector<2x32xf32>
    %c2_64 = arith.constant 2 : index
    %c32_65 = arith.constant 32 : index
    %213 = vector.load %arg13[%c2_64, %c32_65] : memref<16x64xf32, #tpu.memory_space<vmem>>, vector<2x32xf32>
    tpu.vector_store %arg13[%c2_64, %c32_65], %212 {strides = array<i32>} : memref<16x64xf32, #tpu.memory_space<vmem>>, vector<2x32xf32>,
    %214 = vector.extract_strided_slice %5 {offsets = [14, 0], sizes = [2, 192], strides = [1, 1]} : vector<16x192xf32> to vector<2x192xf32>
    %cst_66 = arith.constant dense<0.000000e+00> : vector<2x192xf32>
    %215 = tpu.matmul %209, %6, %cst_66 {dimension_numbers = #tpu.dot_dimension_numbers<[1], [0], [0], [1], [0, 0, 1, 1], [], []>} : vector<2x64xf32>, vector<64x192xf32>, vector<2x192xf32> -> vector<2x192xf32>
    %216 = vector.extract_strided_slice %214 {offsets = [0, 0], sizes = [2, 128], strides = [1, 1]} : vector<2x192xf32> to vector<2x128xf32>
    %217 = vector.extract_strided_slice %215 {offsets = [0, 0], sizes = [2, 128], strides = [1, 1]} : vector<2x192xf32> to vector<2x128xf32>
    %218 = arith.addf %216, %217 : vector<2x128xf32>
    %cst_67 = arith.constant 5.000000e-01 : f32
    %219 = vector.broadcast %cst_67 : f32 to vector<2x128xf32>
    %220 = arith.mulf %219, %218 : vector<2x128xf32>
    %221 = math.tanh %220 : vector<2x128xf32>
    %cst_68 = arith.constant 1.000000e+00 : f32
    %222 = vector.broadcast %cst_68 : f32 to vector<2x128xf32>
    %223 = arith.addf %221, %222 : vector<2x128xf32>
    %cst_69 = arith.constant 5.000000e-01 : f32
    %224 = vector.broadcast %cst_69 : f32 to vector<2x128xf32>
    %225 = arith.mulf %224, %223 : vector<2x128xf32>
    %226 = vector.extract_strided_slice %225 {offsets = [0, 0], sizes = [2, 64], strides = [1, 1]} : vector<2x128xf32> to vector<2x64xf32>
    %227 = vector.extract_strided_slice %225 {offsets = [0, 64], sizes = [2, 64], strides = [1, 1]} : vector<2x128xf32> to vector<2x64xf32>
    %228 = vector.extract_strided_slice %214 {offsets = [0, 128], sizes = [2, 64], strides = [1, 1]} : vector<2x192xf32> to vector<2x64xf32>
    %229 = vector.extract_strided_slice %215 {offsets = [0, 128], sizes = [2, 64], strides = [1, 1]} : vector<2x192xf32> to vector<2x64xf32>
    %230 = arith.addf %229, %9 : vector<2x64xf32>
    %231 = arith.mulf %226, %230 : vector<2x64xf32>
    %232 = arith.addf %228, %231 : vector<2x64xf32>
    %233 = math.tanh %232 : vector<2x64xf32>
    %cst_70 = arith.constant 1.000000e+00 : f32
    %234 = vector.broadcast %cst_70 : f32 to vector<2x64xf32>
    %235 = arith.subf %234, %227 : vector<2x64xf32>
    %236 = arith.mulf %235, %233 : vector<2x64xf32>
    %237 = arith.mulf %227, %209 : vector<2x64xf32>
    %238 = arith.addf %236, %237 : vector<2x64xf32>
    %239 = vector.extract_strided_slice %238 {offsets = [0, 0], sizes = [2, 32], strides = [1, 1]} : vector<2x64xf32> to vector<2x32xf32>
    %c14_71 = arith.constant 14 : index
    %c0_72 = arith.constant 0 : index
    %240 = vector.load %arg13[%c14_71, %c0_72] : memref<16x64xf32, #tpu.memory_space<vmem>>, vector<2x32xf32>
    tpu.vector_store %arg13[%c14_71, %c0_72], %239 {strides = array<i32>} : memref<16x64xf32, #tpu.memory_space<vmem>>, vector<2x32xf32>,
    %241 = vector.extract_strided_slice %238 {offsets = [0, 32], sizes = [2, 32], strides = [1, 1]} : vector<2x64xf32> to vector<2x32xf32>
    %c0_73 = arith.constant 0 : index
    %c32_74 = arith.constant 32 : index
    %242 = vector.load %arg13[%c0_73, %c32_74] : memref<16x64xf32, #tpu.memory_space<vmem>>, vector<2x32xf32>
    tpu.vector_store %arg13[%c0_73, %c32_74], %241 {strides = array<i32>} : memref<16x64xf32, #tpu.memory_space<vmem>>, vector<2x32xf32>,
    %c0_75 = arith.constant 0 : index
    %c0_76 = arith.constant 0 : index
    %243 = vector.load %arg13[%c0_75, %c0_76] : memref<16x64xf32, #tpu.memory_space<vmem>>, vector<16x64xf32>
    %c0_77 = arith.constant 0 : index
    %c0_78 = arith.constant 0 : index
    %244 = vector.load %arg7[%c0_77, %c0_78] : memref<64x192xf32, #tpu.memory_space<vmem>>, vector<64x192xf32>
    %cst_79 = arith.constant dense<0.000000e+00> : vector<16x192xf32>
    %245 = tpu.matmul %243, %244, %cst_79 {dimension_numbers = #tpu.dot_dimension_numbers<[1], [0], [0], [1], [0, 0, 1, 1], [], []>} : vector<16x64xf32>, vector<64x192xf32>, vector<16x192xf32> -> vector<16x192xf32>
    %c0_80 = arith.constant 0 : index
    %c0_81 = arith.constant 0 : index
    %246 = vector.load %arg8[%c0_80, %c0_81] : memref<1x192xf32, #tpu.memory_space<vmem>>, vector<1x192xf32>
    %247 = vector.broadcast %246 : vector<1x192xf32> to vector<16x192xf32>
    %248 = arith.addf %245, %247 : vector<16x192xf32>
    %249 = vector.extract_strided_slice %248 {offsets = [0, 0], sizes = [16, 64], strides = [1, 1]} : vector<16x192xf32> to vector<16x64xf32>
    %250 = vector.extract_strided_slice %248 {offsets = [0, 64], sizes = [16, 64], strides = [1, 1]} : vector<16x192xf32> to vector<16x64xf32>
    %251 = vector.extract_strided_slice %248 {offsets = [0, 128], sizes = [16, 64], strides = [1, 1]} : vector<16x192xf32> to vector<16x64xf32>
    %c0_82 = arith.constant 0 : index
    %c0_83 = arith.constant 0 : index
    %252 = vector.load %arg9[%c0_82, %c0_83] : memref<4x64xf32, #tpu.memory_space<vmem>>, vector<4x64xf32>
    %cst_84 = arith.constant dense<0.000000e+00> : vector<4x16xf32>
    %253 = tpu.matmul %252, %251, %cst_84 {dimension_numbers = #tpu.dot_dimension_numbers<[1], [1], [0], [0], [0, 0, 1, 0], [], []>} : vector<4x64xf32>, vector<16x64xf32>, vector<4x16xf32> -> vector<4x16xf32>
    %c0_85 = arith.constant 0 : index
    %c0_86 = arith.constant 0 : index
    %254 = vector.load %arg10[%c0_85, %c0_86] : memref<16x16xf32, #tpu.memory_space<vmem>>, vector<16x16xf32>
    %cst_87 = arith.constant 0.000000e+00 : f32
    %255 = vector.broadcast %cst_87 : f32 to vector<16x16xf32>
    %256 = vector.extract_strided_slice %249 {offsets = [0, 0], sizes = [16, 16], strides = [1, 1]} : vector<16x64xf32> to vector<16x16xf32>
    %257 = vector.extract_strided_slice %250 {offsets = [0, 0], sizes = [16, 16], strides = [1, 1]} : vector<16x64xf32> to vector<16x16xf32>
    %cst_88 = arith.constant dense<0.000000e+00> : vector<16x16xf32>
    %258 = tpu.matmul %256, %257, %cst_88 {dimension_numbers = #tpu.dot_dimension_numbers<[1], [1], [0], [0], [0, 0, 1, 0], [], []>} : vector<16x16xf32>, vector<16x16xf32>, vector<16x16xf32> -> vector<16x16xf32>
    %259 = arith.addf %258, %254 : vector<16x16xf32>
    %cst_89 = arith.constant dense<0xFF800000> : vector<16xf32>
    %260 = vector.multi_reduction <maximumf>, %259, %cst_89 [1] : vector<16x16xf32> to vector<16xf32>
    %261 = vector.shape_cast %260 : vector<16xf32> to vector<16x1xf32>
    %262 = vector.broadcast %261 : vector<16x1xf32> to vector<16x16xf32>
    %263 = arith.subf %259, %262 : vector<16x16xf32>
    %264 = math.exp %263 : vector<16x16xf32>
    %cst_90 = arith.constant dense<0.000000e+00> : vector<16xf32>
    %265 = vector.multi_reduction <add>, %264, %cst_90 [1] : vector<16x16xf32> to vector<16xf32>
    %266 = vector.shape_cast %265 : vector<16xf32> to vector<16x1xf32>
    %267 = tpu.reciprocal %266 {approx = true} : vector<16x1xf32> -> vector<16x1xf32>
    %268 = vector.broadcast %267 : vector<16x1xf32> to vector<16x16xf32>
    %269 = arith.mulf %264, %268 : vector<16x16xf32>
    %270 = vector.extract_strided_slice %253 {offsets = [0, 0], sizes = [1, 16], strides = [1, 1]} : vector<4x16xf32> to vector<1x16xf32>
    %271 = vector.broadcast %270 : vector<1x16xf32> to vector<16x16xf32>
    %272 = arith.mulf %269, %271 : vector<16x16xf32>
    %273 = arith.addf %255, %272 : vector<16x16xf32>
    %274 = vector.extract_strided_slice %249 {offsets = [0, 16], sizes = [16, 16], strides = [1, 1]} : vector<16x64xf32> to vector<16x16xf32>
    %275 = vector.extract_strided_slice %250 {offsets = [0, 16], sizes = [16, 16], strides = [1, 1]} : vector<16x64xf32> to vector<16x16xf32>
    %cst_91 = arith.constant dense<0.000000e+00> : vector<16x16xf32>
    %276 = tpu.matmul %274, %275, %cst_91 {dimension_numbers = #tpu.dot_dimension_numbers<[1], [1], [0], [0], [0, 0, 1, 0], [], []>} : vector<16x16xf32>, vector<16x16xf32>, vector<16x16xf32> -> vector<16x16xf32>
    %277 = arith.addf %276, %254 : vector<16x16xf32>
    %cst_92 = arith.constant dense<0xFF800000> : vector<16xf32>
    %278 = vector.multi_reduction <maximumf>, %277, %cst_92 [1] : vector<16x16xf32> to vector<16xf32>
    %279 = vector.shape_cast %278 : vector<16xf32> to vector<16x1xf32>
    %280 = vector.broadcast %279 : vector<16x1xf32> to vector<16x16xf32>
    %281 = arith.subf %277, %280 : vector<16x16xf32>
    %282 = math.exp %281 : vector<16x16xf32>
    %cst_93 = arith.constant dense<0.000000e+00> : vector<16xf32>
    %283 = vector.multi_reduction <add>, %282, %cst_93 [1] : vector<16x16xf32> to vector<16xf32>
    %284 = vector.shape_cast %283 : vector<16xf32> to vector<16x1xf32>
    %285 = tpu.reciprocal %284 {approx = true} : vector<16x1xf32> -> vector<16x1xf32>
    %286 = vector.broadcast %285 : vector<16x1xf32> to vector<16x16xf32>
    %287 = arith.mulf %282, %286 : vector<16x16xf32>
    %288 = vector.extract_strided_slice %253 {offsets = [1, 0], sizes = [1, 16], strides = [1, 1]} : vector<4x16xf32> to vector<1x16xf32>
    %289 = vector.broadcast %288 : vector<1x16xf32> to vector<16x16xf32>
    %290 = arith.mulf %287, %289 : vector<16x16xf32>
    %291 = arith.addf %273, %290 : vector<16x16xf32>
    %292 = vector.extract_strided_slice %249 {offsets = [0, 32], sizes = [16, 16], strides = [1, 1]} : vector<16x64xf32> to vector<16x16xf32>
    %293 = vector.extract_strided_slice %250 {offsets = [0, 32], sizes = [16, 16], strides = [1, 1]} : vector<16x64xf32> to vector<16x16xf32>
    %cst_94 = arith.constant dense<0.000000e+00> : vector<16x16xf32>
    %294 = tpu.matmul %292, %293, %cst_94 {dimension_numbers = #tpu.dot_dimension_numbers<[1], [1], [0], [0], [0, 0, 1, 0], [], []>} : vector<16x16xf32>, vector<16x16xf32>, vector<16x16xf32> -> vector<16x16xf32>
    %295 = arith.addf %294, %254 : vector<16x16xf32>
    %cst_95 = arith.constant dense<0xFF800000> : vector<16xf32>
    %296 = vector.multi_reduction <maximumf>, %295, %cst_95 [1] : vector<16x16xf32> to vector<16xf32>
    %297 = vector.shape_cast %296 : vector<16xf32> to vector<16x1xf32>
    %298 = vector.broadcast %297 : vector<16x1xf32> to vector<16x16xf32>
    %299 = arith.subf %295, %298 : vector<16x16xf32>
    %300 = math.exp %299 : vector<16x16xf32>
    %cst_96 = arith.constant dense<0.000000e+00> : vector<16xf32>
    %301 = vector.multi_reduction <add>, %300, %cst_96 [1] : vector<16x16xf32> to vector<16xf32>
    %302 = vector.shape_cast %301 : vector<16xf32> to vector<16x1xf32>
    %303 = tpu.reciprocal %302 {approx = true} : vector<16x1xf32> -> vector<16x1xf32>
    %304 = vector.broadcast %303 : vector<16x1xf32> to vector<16x16xf32>
    %305 = arith.mulf %300, %304 : vector<16x16xf32>
    %306 = vector.extract_strided_slice %253 {offsets = [2, 0], sizes = [1, 16], strides = [1, 1]} : vector<4x16xf32> to vector<1x16xf32>
    %307 = vector.broadcast %306 : vector<1x16xf32> to vector<16x16xf32>
    %308 = arith.mulf %305, %307 : vector<16x16xf32>
    %309 = arith.addf %291, %308 : vector<16x16xf32>
    %310 = vector.extract_strided_slice %249 {offsets = [0, 48], sizes = [16, 16], strides = [1, 1]} : vector<16x64xf32> to vector<16x16xf32>
    %311 = vector.extract_strided_slice %250 {offsets = [0, 48], sizes = [16, 16], strides = [1, 1]} : vector<16x64xf32> to vector<16x16xf32>
    %cst_97 = arith.constant dense<0.000000e+00> : vector<16x16xf32>
    %312 = tpu.matmul %310, %311, %cst_97 {dimension_numbers = #tpu.dot_dimension_numbers<[1], [1], [0], [0], [0, 0, 1, 0], [], []>} : vector<16x16xf32>, vector<16x16xf32>, vector<16x16xf32> -> vector<16x16xf32>
    %313 = arith.addf %312, %254 : vector<16x16xf32>
    %cst_98 = arith.constant dense<0xFF800000> : vector<16xf32>
    %314 = vector.multi_reduction <maximumf>, %313, %cst_98 [1] : vector<16x16xf32> to vector<16xf32>
    %315 = vector.shape_cast %314 : vector<16xf32> to vector<16x1xf32>
    %316 = vector.broadcast %315 : vector<16x1xf32> to vector<16x16xf32>
    %317 = arith.subf %313, %316 : vector<16x16xf32>
    %318 = math.exp %317 : vector<16x16xf32>
    %cst_99 = arith.constant dense<0.000000e+00> : vector<16xf32>
    %319 = vector.multi_reduction <add>, %318, %cst_99 [1] : vector<16x16xf32> to vector<16xf32>
    %320 = vector.shape_cast %319 : vector<16xf32> to vector<16x1xf32>
    %321 = tpu.reciprocal %320 {approx = true} : vector<16x1xf32> -> vector<16x1xf32>
    %322 = vector.broadcast %321 : vector<16x1xf32> to vector<16x16xf32>
    %323 = arith.mulf %318, %322 : vector<16x16xf32>
    %324 = vector.extract_strided_slice %253 {offsets = [3, 0], sizes = [1, 16], strides = [1, 1]} : vector<4x16xf32> to vector<1x16xf32>
    %325 = vector.broadcast %324 : vector<1x16xf32> to vector<16x16xf32>
    %326 = arith.mulf %323, %325 : vector<16x16xf32>
    %327 = arith.addf %309, %326 : vector<16x16xf32>
    %cst_100 = arith.constant dense<0.000000e+00> : vector<16xf32>
    %328 = vector.multi_reduction <add>, %327, %cst_100 [1] : vector<16x16xf32> to vector<16xf32>
    %329 = vector.shape_cast %328 : vector<16xf32> to vector<16x1xf32>
    %c0_101 = arith.constant 0 : index
    %c0_102 = arith.constant 0 : index
    %330 = vector.load %arg11[%c0_101, %c0_102] : memref<1x1xf32, #tpu.memory_space<vmem>>, vector<1x1xf32>
    %331 = vector.broadcast %330 : vector<1x1xf32> to vector<16x1xf32>
    %332 = arith.addf %329, %331 : vector<16x1xf32>
    %c0_103 = arith.constant 0 : index
    %c0_104 = arith.constant 0 : index
    %333 = vector.load %arg12[%c0_103, %c0_104] : memref<16x1xf32, #tpu.memory_space<vmem>>, vector<16x1xf32>
    tpu.vector_store %arg12[%c0_103, %c0_104], %332 {strides = array<i32>} : memref<16x1xf32, #tpu.memory_space<vmem>>, vector<16x1xf32>,
    return
  }
  func.func @transform_0(%arg0: i32) -> (i32, i32) {
    %c0_i32 = arith.constant 0 : i32
    %c0_i32_0 = arith.constant 0 : i32
    %c0_i32_1 = arith.constant 0 : i32
    return %c0_i32, %c0_i32_0 : i32, i32
  }
  func.func @transform_1(%arg0: i32) -> (i32, i32) {
    %c0_i32 = arith.constant 0 : i32
    %c0_i32_0 = arith.constant 0 : i32
    %c0_i32_1 = arith.constant 0 : i32
    return %c0_i32, %c0_i32_0 : i32, i32
  }
  func.func @transform_2(%arg0: i32) -> (i32, i32) {
    %c0_i32 = arith.constant 0 : i32
    %c0_i32_0 = arith.constant 0 : i32
    %c0_i32_1 = arith.constant 0 : i32
    return %c0_i32, %c0_i32_0 : i32, i32
  }
  func.func @transform_3(%arg0: i32) -> (i32, i32) {
    %c0_i32 = arith.constant 0 : i32
    %c0_i32_0 = arith.constant 0 : i32
    %c0_i32_1 = arith.constant 0 : i32
    return %c0_i32, %c0_i32_0 : i32, i32
  }
  func.func @transform_4(%arg0: i32) -> (i32, i32) {
    %c0_i32 = arith.constant 0 : i32
    %c0_i32_0 = arith.constant 0 : i32
    %c0_i32_1 = arith.constant 0 : i32
    return %c0_i32, %c0_i32_0 : i32, i32
  }
  func.func @transform_5(%arg0: i32) -> (i32, i32) {
    %c0_i32 = arith.constant 0 : i32
    %c0_i32_0 = arith.constant 0 : i32
    %c0_i32_1 = arith.constant 0 : i32
    return %c0_i32, %c0_i32_0 : i32, i32
  }
  func.func @transform_6(%arg0: i32) -> (i32, i32) {
    %c0_i32 = arith.constant 0 : i32
    %c0_i32_0 = arith.constant 0 : i32
    %c0_i32_1 = arith.constant 0 : i32
    return %c0_i32, %c0_i32_0 : i32, i32
  }
  func.func @transform_7(%arg0: i32) -> (i32, i32) {
    %c0_i32 = arith.constant 0 : i32
    %c0_i32_0 = arith.constant 0 : i32
    %c0_i32_1 = arith.constant 0 : i32
    return %c0_i32, %c0_i32_0 : i32, i32
  }
  func.func @transform_8(%arg0: i32) -> (i32, i32) {
    %c0_i32 = arith.constant 0 : i32
    %c0_i32_0 = arith.constant 0 : i32
    %c0_i32_1 = arith.constant 0 : i32
    return %c0_i32, %c0_i32_0 : i32, i32
  }
  func.func @transform_9(%arg0: i32) -> (i32, i32) {
    %c0_i32 = arith.constant 0 : i32
    %c0_i32_0 = arith.constant 0 : i32
    %c0_i32_1 = arith.constant 0 : i32
    return %c0_i32, %c0_i32_0 : i32, i32
  }
  func.func @transform_10(%arg0: i32) -> (i32, i32) {
    %c0_i32 = arith.constant 0 : i32
    %c0_i32_0 = arith.constant 0 : i32
    %c0_i32_1 = arith.constant 0 : i32
    return %c0_i32, %c0_i32_0 : i32, i32
  }
  func.func @transform_11(%arg0: i32) -> (i32, i32) {
    %c0_i32 = arith.constant 0 : i32
    %c0_i32_0 = arith.constant 0 : i32
    %c0_i32_1 = arith.constant 0 : i32
    return %c0_i32, %c0_i32_0 : i32, i32
  }
}

</mosaic_0001>

<llo_original>
// kernel: tpu_custom_call.1
$region0: #{tpu_custom_call.1}
  #allocation0 [shape = 'u32[]', space=smem, size = 0x4, offset = 0x4, fixed_abs, tag = 'smem constant byte address 0x4 - core index']
  #allocation1 [shape = 'u32[144,128]{1,0:T(1,128)}', space=vmem, size = 0x12000, scoped, tag = 'internal scratch']
  #allocation2 [shape = 'f32[16,64]{1,0:T(8,128)}', space=vmem, size = 0x2000, scoped, tag = 'scratch operand']
  #allocation3 [shape = 'f32[1,1]{1,0:T(1,128)S(1)}', space=vmem, size = 0x200, scoped, tag = 'scoped memory for tpu_custom_call.1']
  %s0 = inlined_call_operand.hbm [shape: f32[16,64], index: 0, kind: input, shape index: {}]
  %s1 = inlined_call_operand.vmem [shape: f32[2,64], index: 1, kind: input, shape index: {}]
  %s2 = inlined_call_operand.hbm [shape: f32[64,192], index: 2, kind: input, shape index: {}]
  %s3 = inlined_call_operand.vmem [shape: f32[1,192], index: 3, kind: input, shape index: {}]
  %s4 = inlined_call_operand.hbm [shape: f32[64,192], index: 4, kind: input, shape index: {}]
  %s5 = inlined_call_operand.vmem [shape: f32[1,64], index: 5, kind: input, shape index: {}]
  %s6 = inlined_call_operand.hbm [shape: f32[64,192], index: 6, kind: input, shape index: {}]
  %s7 = inlined_call_operand.vmem [shape: f32[1,192], index: 7, kind: input, shape index: {}]
  %s8 = inlined_call_operand.vmem [shape: f32[4,64], index: 8, kind: input, shape index: {}]
  %s9 = inlined_call_operand.vmem [shape: f32[16,16], index: 9, kind: input, shape index: {}]
  %s10 = inlined_call_operand.<no memory space> [shape: f32[1,1], index: 10, kind: input, shape index: {}]
  %s11 = inlined_call_operand.vmem [shape: f32[16,1], index: 11, kind: output, shape index: {}]
  %s12 = sld [smem:[#allocation0]]
  $region70: #{tpu_custom_call.1} parent=0
    _
  %s14 = ssub.s32 1, %s12
  %s15 = scalar_select 0, %s14, %s12
  %v16 = vstv %s10
  %17 = vst [vmem:[#allocation3] sm:$0x1] %v16
  $region1: #{tpu_custom_call.1} parent=0
    #allocation4 [shape = 'u8[8192]{0}', space=vmem, size = 0x2000, scoped, tag = 'input window, operand 0, single buffered']
    #allocation5 [shape = 's32[1]{0}', space=sflag, size = 0x4, scoped, tag = 'scoped memory for tpu_custom_call.1']
    #allocation6 [shape = 'u8[65536]{0}', space=vmem, size = 0x10000, scoped, tag = 'input window, operand 2, single buffered']
    #allocation7 [shape = 's32[1]{0}', space=sflag, size = 0x4, scoped, tag = 'scoped memory for tpu_custom_call.1']
    #allocation8 [shape = 'u8[65536]{0}', space=vmem, size = 0x10000, scoped, tag = 'input window, operand 4, single buffered']
    #allocation9 [shape = 'u8[65536]{0}', space=vmem, size = 0x10000, scoped, tag = 'input window, operand 6, single buffered']
    #allocation10 [shape = 's32[1]{0}', space=sflag, size = 0x4, scoped, tag = 'scoped memory for tpu_custom_call.1']
    %18 = vsyncpa [#allocation5], 0
    %19 = vsyncpa [#allocation7], 0
    %20 = vsyncpa [#allocation10], 0
    // Predicated region
    $region2: #{tpu_custom_call.1} parent=1 // pred_check
      _
    $region3: #{tpu_custom_call.1} parent=1 // pred_check_branch
      %22 = sbr.rel (0) target = $region5
    $region4: #{tpu_custom_call.1} parent=1 // pred_region
      %s24 = ssub.s32 256, 256
      %25 = vsyncadd [#allocation5], %s24
      %s26 = sshll.u32 [#allocation4], 4
      %s27 = int_to_ptr.vmem [resolvable:$true] %s26
      %32 = dma.hbm_to_vmem [thread:$0]  %s0, 256, %s27, [#allocation5], 128, 128, 8
    $region5: #{tpu_custom_call.1} parent=1 // pred_fallthru
      _
    // Predicated region
    $region6: #{tpu_custom_call.1} parent=1 // pred_check
      _
    $region7: #{tpu_custom_call.1} parent=1 // pred_check_branch
      %34 = sbr.rel (0) target = $region9
    $region8: #{tpu_custom_call.1} parent=1 // pred_region
      _
    $region9: #{tpu_custom_call.1} parent=1 // pred_fallthru
      _
    // Predicated region
    $region10: #{tpu_custom_call.1} parent=1 // pred_check
      _
    $region11: #{tpu_custom_call.1} parent=1 // pred_check_branch
      %36 = sbr.rel (0) target = $region13
    $region12: #{tpu_custom_call.1} parent=1 // pred_region
      %s38 = ssub.s32 2048, 2048
      %39 = vsyncadd [#allocation7], %s38
      %s40 = sshll.u32 [#allocation6], 4
      %s41 = int_to_ptr.vmem [resolvable:$true] %s40
      %46 = dma.hbm_to_vmem [thread:$0]  %s2, 2048, %s41, [#allocation7], 256, 256, 16
    $region13: #{tpu_custom_call.1} parent=1 // pred_fallthru
      _
    // Predicated region
    $region14: #{tpu_custom_call.1} parent=1 // pred_check
      _
    $region15: #{tpu_custom_call.1} parent=1 // pred_check_branch
      %48 = sbr.rel (0) target = $region17
    $region16: #{tpu_custom_call.1} parent=1 // pred_region
      _
    $region17: #{tpu_custom_call.1} parent=1 // pred_fallthru
      _
    // Predicated region
    $region18: #{tpu_custom_call.1} parent=1 // pred_check
      _
    $region19: #{tpu_custom_call.1} parent=1 // pred_check_branch
      %50 = sbr.rel (0) target = $region21
    $region20: #{tpu_custom_call.1} parent=1 // pred_region
      %s52 = ssub.s32 2048, 2048
      %53 = vsyncadd [#allocation7], %s52
      %s54 = sshll.u32 [#allocation8], 4
      %s55 = int_to_ptr.vmem [resolvable:$true] %s54
      %60 = dma.hbm_to_vmem [thread:$0]  %s4, 2048, %s55, [#allocation7], 256, 256, 16
    $region21: #{tpu_custom_call.1} parent=1 // pred_fallthru
      _
    // Predicated region
    $region22: #{tpu_custom_call.1} parent=1 // pred_check
      _
    $region23: #{tpu_custom_call.1} parent=1 // pred_check_branch
      %62 = sbr.rel (0) target = $region25
    $region24: #{tpu_custom_call.1} parent=1 // pred_region
      _
    $region25: #{tpu_custom_call.1} parent=1 // pred_fallthru
      _
    // Predicated region
    $region26: #{tpu_custom_call.1} parent=1 // pred_check
      _
    $region27: #{tpu_custom_call.1} parent=1 // pred_check_branch
      %64 = sbr.rel (0) target = $region29
    $region28: #{tpu_custom_call.1} parent=1 // pred_region
      %s66 = ssub.s32 2048, 2048
      %67 = vsyncadd [#allocation10], %s66
      %s68 = sshll.u32 [#allocation9], 4
      %s69 = int_to_ptr.vmem [resolvable:$true] %s68
      %74 = dma.hbm_to_vmem [thread:$0]  %s6, 2048, %s69, [#allocation10], 256, 256, 16
    $region29: #{tpu_custom_call.1} parent=1 // pred_fallthru
      _
    // Predicated region
    $region30: #{tpu_custom_call.1} parent=1 // pred_check
      _
    $region31: #{tpu_custom_call.1} parent=1 // pred_check_branch
      %76 = sbr.rel (0) target = $region33
    $region32: #{tpu_custom_call.1} parent=1 // pred_region
      _
    $region33: #{tpu_custom_call.1} parent=1 // pred_fallthru
      _
    // Predicated region
    $region34: #{tpu_custom_call.1} parent=1 // pred_check
      _
    $region35: #{tpu_custom_call.1} parent=1 // pred_check_branch
      %78 = sbr.rel (0) target = $region37
    $region36: #{tpu_custom_call.1} parent=1 // pred_region
      _
    $region37: #{tpu_custom_call.1} parent=1 // pred_fallthru
      _
    // Predicated region
    $region38: #{tpu_custom_call.1} parent=1 // pred_check
      _
    $region39: #{tpu_custom_call.1} parent=1 // pred_check_branch
      %80 = sbr.rel (0) target = $region41
    $region40: #{tpu_custom_call.1} parent=1 // pred_region
      _
    $region41: #{tpu_custom_call.1} parent=1 // pred_fallthru
      _
    // Predicated region
    $region42: #{tpu_custom_call.1} parent=1 // pred_check
      _
    $region43: #{tpu_custom_call.1} parent=1 // pred_check_branch
      %82 = sbr.rel (0) target = $region45
    $region44: #{tpu_custom_call.1} parent=1 // pred_region
      _
    $region45: #{tpu_custom_call.1} parent=1 // pred_fallthru
      _
    // Predicated region
    $region46: #{tpu_custom_call.1} parent=1 // pred_check
      _
    $region47: #{tpu_custom_call.1} parent=1 // pred_check_branch
      %84 = sbr.rel (0) target = $region49
    $region48: #{tpu_custom_call.1} parent=1 // pred_region
      %85 = dma.done [#allocation5], 256
    $region49: #{tpu_custom_call.1} parent=1 // pred_fallthru
      _
    // Predicated region
    $region50: #{tpu_custom_call.1} parent=1 // pred_check
      _
    $region51: #{tpu_custom_call.1} parent=1 // pred_check_branch
      %87 = sbr.rel (0) target = $region53
    $region52: #{tpu_custom_call.1} parent=1 // pred_region
      %88 = dma.done [#allocation7], 2048
    $region53: #{tpu_custom_call.1} parent=1 // pred_fallthru
      _
    // Predicated region
    $region54: #{tpu_custom_call.1} parent=1 // pred_check
      _
    $region55: #{tpu_custom_call.1} parent=1 // pred_check_branch
      %90 = sbr.rel (0) target = $region57
    $region56: #{tpu_custom_call.1} parent=1 // pred_region
      %91 = dma.done [#allocation7], 2048
    $region57: #{tpu_custom_call.1} parent=1 // pred_fallthru
      _
    // Predicated region
    $region58: #{tpu_custom_call.1} parent=1 // pred_check
      _
    $region59: #{tpu_custom_call.1} parent=1 // pred_check_branch
      %93 = sbr.rel (0) target = $region61
    $region60: #{tpu_custom_call.1} parent=1 // pred_region
      %94 = dma.done [#allocation10], 2048
    $region61: #{tpu_custom_call.1} parent=1 // pred_fallthru
      _
    %v95 = vld [vmem:[#allocation4] sm:$0xff]
    %v96 = vld [vmem:[#allocation4 + $0x8] sm:$0xff]
    %v97 = vld [vmem:[#allocation6] sm:$0xff]
    %v98 = vld [vmem:[#allocation6 + $0x8] sm:$0xff]
    %v99 = vld [vmem:[#allocation6 + $0x10] sm:$0xff]
    %v100 = vld [vmem:[#allocation6 + $0x18] sm:$0xff]
    %v101 = vld [vmem:[#allocation6 + $0x20] sm:$0xff]
    %v102 = vld [vmem:[#allocation6 + $0x28] sm:$0xff]
    %v103 = vld [vmem:[#allocation6 + $0x30] sm:$0xff]
    %v104 = vld [vmem:[#allocation6 + $0x38] sm:$0xff]
    %v105 = vld [vmem:[#allocation6 + $0x40] sm:$0xff]
    %v106 = vld [vmem:[#allocation6 + $0x48] sm:$0xff]
    %v107 = vld [vmem:[#allocation6 + $0x50] sm:$0xff]
    %v108 = vld [vmem:[#allocation6 + $0x58] sm:$0xff]
    %v109 = vld [vmem:[#allocation6 + $0x60] sm:$0xff]
    %v110 = vld [vmem:[#allocation6 + $0x68] sm:$0xff]
    %v111 = vld [vmem:[#allocation6 + $0x70] sm:$0xff]
    %v112 = vld [vmem:[#allocation6 + $0x78] sm:$0xff]
    %v113 = vld [vmem:[%s3] sm:$0x3]
    %v115 = vlaneseq
    %v116 = vshrl.u32 %v115, 7
    %v117 = vsub.s32 0, %v116
    %v118 = vrot.slane %v113, %v117
    %v119 = vlaneseq
    %v120 = vshrl.u32 %v119, 7
    %v121 = vsub.s32 1, %v120
    %v122 = vrot.slane %v113, %v121
    %vm125 = vcmask 523264
    %v127 = vsel %vm125, %v95, 0
    %v130 = vsel %vm125, %v96, 0
    %132 = vmatprep.subr.mxu0 %v98
    %133 = vmatpush1.msra.mxu0 %v97
    %134 = vmatprep.subr.mxu0 %v100
    %135 = vmatpush1.msra.mxu0 %v99
    %136 = vmatprep.subr.mxu0 %v102
    %137 = vmatpush1.msra.mxu0 %v101
    %138 = vmatprep.subr.mxu0 %v104
    %139 = vmatpush1.msra.mxu0 %v103
    %140 = vmatprep.subr.mxu0 %v106
    %141 = vmatpush1.msra.mxu0 %v105
    %142 = vmatprep.subr.mxu0 %v108
    %143 = vmatpush1.msra.mxu0 %v107
    %144 = vmatprep.subr.mxu0 %v110
    %145 = vmatpush1.msra.mxu0 %v109
    %146 = vmatprep.subr.mxu0 %v112
    %147 = vmatpush1.msra.mxu0 %v111
    %148 = vmatprep.subr.mxu0 0.0
    %149 = vmatpush1.msra.mxu0 0.0
    %150 = vmatprep.subr.mxu0 0.0
    %151 = vmatpush1.msra.mxu0 0.0
    %152 = vmatprep.subr.mxu0 0.0
    %153 = vmatpush1.msra.mxu0 0.0
    %154 = vmatprep.subr.mxu0 0.0
    %155 = vmatpush1.msra.mxu0 0.0
    %156 = vmatprep.subr.mxu0 0.0
    %157 = vmatpush1.msra.mxu0 0.0
    %158 = vmatprep.subr.mxu0 0.0
    %159 = vmatpush1.msra.mxu0 0.0
    %160 = vmatprep.subr.mxu0 0.0
    %161 = vmatpush1.msra.mxu0 0.0
    %162 = vmatprep.subr.mxu0 0.0
    %163 = vmatpush1.msra.mxu0 0.0
    %164 = vmatprep.subr.mxu0 0.0
    %165 = vmatpush1.msra.mxu0 0.0
    %166 = vmatprep.subr.mxu0 0.0
    %167 = vmatpush1.msra.mxu0 0.0
    %168 = vmatprep.subr.mxu0 0.0
    %169 = vmatpush1.msra.mxu0 0.0
    %170 = vmatprep.subr.mxu0 0.0
    %171 = vmatpush1.msra.mxu0 0.0
    %172 = vmatprep.subr.mxu0 0.0
    %173 = vmatpush1.msra.mxu0 0.0
    %174 = vmatprep.subr.mxu0 0.0
    %175 = vmatpush1.msra.mxu0 0.0
    %176 = vmatprep.subr.mxu0 0.0
    %177 = vmatpush1.msra.mxu0 0.0
    %178 = vmatprep.subr.mxu0 0.0
    %179 = vmatpush1.msra.mxu0 0.0
    %180 = vmatprep.subr.mxu0 0.0
    %181 = vmatpush1.msra.mxu0 0.0
    %182 = vmatprep.subr.mxu0 0.0
    %183 = vmatpush1.msra.mxu0 0.0
    %184 = vmatprep.subr.mxu0 0.0
    %185 = vmatpush1.msra.mxu0 0.0
    %186 = vmatprep.subr.mxu0 0.0
    %187 = vmatpush1.msra.mxu0 0.0
    %188 = vmatprep.subr.mxu0 0.0
    %189 = vmatpush1.msra.mxu0 0.0
    %190 = vmatprep.subr.mxu0 0.0
    %191 = vmatpush1.msra.mxu0 0.0
    %192 = vmatprep.subr.mxu0 0.0
    %193 = vmatpush1.msra.mxu0 0.0
    %194 = vmatprep.subr.mxu0 0.0
    %195 = vmatpush1.msra.mxu0 0.0
    %196 = vmatprep.mubr.f32.mxu0 0.0
    %197 = vmatmul.mubr.f32.gmra.mrb[0].mxu0 %v127
    %v198 = vpop.f32.mrb[0].mxu0
    %v199 = vadd.f32 %v118, %v198
    %v200 = vpop.f32.mrb[0].mxu0
    %v201 = vadd.f32 %v122, %v200
    %202 = vmatprep.mubr.f32.mxu0 0.0
    %203 = vmatmul.mubr.f32.gmra.mrb[0].mxu0 %v130
    %v204 = vpop.f32.mrb[0].mxu0
    %v205 = vadd.f32 %v118, %v204
    %v206 = vpop.f32.mrb[0].mxu0
    %v207 = vadd.f32 %v122, %v206
    %208 = vdwg.mxu0
    %v209 = vld [vmem:[#allocation8] sm:$0xff]
    %v210 = vld [vmem:[#allocation8 + $0x8] sm:$0xff]
    %v211 = vld [vmem:[#allocation8 + $0x10] sm:$0xff]
    %v212 = vld [vmem:[#allocation8 + $0x18] sm:$0xff]
    %v213 = vld [vmem:[#allocation8 + $0x20] sm:$0xff]
    %v214 = vld [vmem:[#allocation8 + $0x28] sm:$0xff]
    %v215 = vld [vmem:[#allocation8 + $0x30] sm:$0xff]
    %v216 = vld [vmem:[#allocation8 + $0x38] sm:$0xff]
    %v217 = vld [vmem:[#allocation8 + $0x40] sm:$0xff]
    %v218 = vld [vmem:[#allocation8 + $0x48] sm:$0xff]
    %v219 = vld [vmem:[#allocation8 + $0x50] sm:$0xff]
    %v220 = vld [vmem:[#allocation8 + $0x58] sm:$0xff]
    %v221 = vld [vmem:[#allocation8 + $0x60] sm:$0xff]
    %v222 = vld [vmem:[#allocation8 + $0x68] sm:$0xff]
    %v223 = vld [vmem:[#allocation8 + $0x70] sm:$0xff]
    %v224 = vld [vmem:[#allocation8 + $0x78] sm:$0xff]
    %v225 = vld [vmem:[%s5] sm:$0x1]
    %v227 = vlaneseq
    %v228 = vshrl.u32 %v227, 7
    %v229 = vsub.s32 0, %v228
    %v230 = vrot.slane %v225, %v229
    %v232 = vld [vmem:[%s1] sm:$0x3]
    %v234 = vsel %vm125, %v232, 0
    %236 = vmatprep.subr.mxu0 %v210
    %237 = vmatpush1.msra.mxu0 %v209
    %238 = vmatprep.subr.mxu0 %v212
    %239 = vmatpush1.msra.mxu0 %v211
    %240 = vmatprep.subr.mxu0 %v214
    %241 = vmatpush1.msra.mxu0 %v213
    %242 = vmatprep.subr.mxu0 %v216
    %243 = vmatpush1.msra.mxu0 %v215
    %244 = vmatprep.subr.mxu0 %v218
    %245 = vmatpush1.msra.mxu0 %v217
    %246 = vmatprep.subr.mxu0 %v220
    %247 = vmatpush1.msra.mxu0 %v219
    %248 = vmatprep.subr.mxu0 %v222
    %249 = vmatpush1.msra.mxu0 %v221
    %250 = vmatprep.subr.mxu0 %v224
    %251 = vmatpush1.msra.mxu0 %v223
    %252 = vmatprep.subr.mxu0 0.0
    %253 = vmatpush1.msra.mxu0 0.0
    %254 = vmatprep.subr.mxu0 0.0
    %255 = vmatpush1.msra.mxu0 0.0
    %256 = vmatprep.subr.mxu0 0.0
    %257 = vmatpush1.msra.mxu0 0.0
    %258 = vmatprep.subr.mxu0 0.0
    %259 = vmatpush1.msra.mxu0 0.0
    %260 = vmatprep.subr.mxu0 0.0
    %261 = vmatpush1.msra.mxu0 0.0
    %262 = vmatprep.subr.mxu0 0.0
    %263 = vmatpush1.msra.mxu0 0.0
    %264 = vmatprep.subr.mxu0 0.0
    %265 = vmatpush1.msra.mxu0 0.0
    %266 = vmatprep.subr.mxu0 0.0
    %267 = vmatpush1.msra.mxu0 0.0
    %268 = vmatprep.subr.mxu0 0.0
    %269 = vmatpush1.msra.mxu0 0.0
    %270 = vmatprep.subr.mxu0 0.0
    %271 = vmatpush1.msra.mxu0 0.0
    %272 = vmatprep.subr.mxu0 0.0
    %273 = vmatpush1.msra.mxu0 0.0
    %274 = vmatprep.subr.mxu0 0.0
    %275 = vmatpush1.msra.mxu0 0.0
    %276 = vmatprep.subr.mxu0 0.0
    %277 = vmatpush1.msra.mxu0 0.0
    %278 = vmatprep.subr.mxu0 0.0
    %279 = vmatpush1.msra.mxu0 0.0
    %280 = vmatprep.subr.mxu0 0.0
    %281 = vmatpush1.msra.mxu0 0.0
    %282 = vmatprep.subr.mxu0 0.0
    %283 = vmatpush1.msra.mxu0 0.0
    %284 = vmatprep.subr.mxu0 0.0
    %285 = vmatpush1.msra.mxu0 0.0
    %286 = vmatprep.subr.mxu0 0.0
    %287 = vmatpush1.msra.mxu0 0.0
    %288 = vmatprep.subr.mxu0 0.0
    %289 = vmatpush1.msra.mxu0 0.0
    %290 = vmatprep.subr.mxu0 0.0
    %291 = vmatpush1.msra.mxu0 0.0
    %292 = vmatprep.subr.mxu0 0.0
    %293 = vmatpush1.msra.mxu0 0.0
    %294 = vmatprep.subr.mxu0 0.0
    %295 = vmatpush1.msra.mxu0 0.0
    %296 = vmatprep.subr.mxu0 0.0
    %297 = vmatpush1.msra.mxu0 0.0
    %298 = vmatprep.subr.mxu0 0.0
    %299 = vmatpush1.msra.mxu0 0.0
    %300 = vmatprep.mubr.f32.mxu0 0.0
    %301 = vmatmul.mubr.f32.gmra.mrb[0].mxu0 %v234
    %v302 = vpop.f32.mrb[0].mxu0
    %v303 = vadd.f32 0.0, %v302
    %v304 = vpop.f32.mrb[0].mxu0
    %v305 = vadd.f32 0.0, %v304
    %306 = vdwg.mxu0
    %v307 = vadd.f32 %v199, %v303
    %v308 = vmul.f32 %v307, 0.5
    %v309 = vtanh.pop %v308
    %v310 = vadd.f32 %v309, 1.0
    %v311 = vmul.f32 %v310, 0.5
    %v312 = vadd.f32 %v305, %v230
    %v313 = vmul.f32 %v311, %v312
    %v314 = vadd.f32 %v201, %v313
    %v315 = vtanh.pop %v314
    %v316 = vsub.f32 1.0, %v311
    %318 = vrot.lane.b32.xlu0 %v315, 64
    %v319 = vpop.permute.xlu0 %318
    %v321 = vmul.f32 %v316, %v319
    %322 = vrot.lane.b32.xlu0 %v232, 64
    %v323 = vpop.permute.xlu0 %322
    %v325 = vmul.f32 %v311, %v323
    %v326 = vadd.f32 %v321, %v325
    %328 = vrot.lane.b32.xlu0 %v326, 64
    %v329 = vpop.permute.xlu0 %328
    %vm331 = vcmask 254976
    %332 = vst.msk [vmem:[#allocation2] sm:$0x3] %vm331, %v329
    %vm333 = vcmask 517376
    %334 = vst.msk [vmem:[#allocation2 + $0xe] sm:$0x3] %vm333, %v329
    %v335 = vsel %vm125, %v329, 0
    %337 = vmatprep.subr.mxu0 %v210
    %338 = vmatpush1.msra.mxu0 %v209
    %339 = vmatprep.subr.mxu0 %v212
    %340 = vmatpush1.msra.mxu0 %v211
    %341 = vmatprep.subr.mxu0 %v214
    %342 = vmatpush1.msra.mxu0 %v213
    %343 = vmatprep.subr.mxu0 %v216
    %344 = vmatpush1.msra.mxu0 %v215
    %345 = vmatprep.subr.mxu0 %v218
    %346 = vmatpush1.msra.mxu0 %v217
    %347 = vmatprep.subr.mxu0 %v220
    %348 = vmatpush1.msra.mxu0 %v219
    %349 = vmatprep.subr.mxu0 %v222
    %350 = vmatpush1.msra.mxu0 %v221
    %351 = vmatprep.subr.mxu0 %v224
    %352 = vmatpush1.msra.mxu0 %v223
    %353 = vmatprep.subr.mxu0 0.0
    %354 = vmatpush1.msra.mxu0 0.0
    %355 = vmatprep.subr.mxu0 0.0
    %356 = vmatpush1.msra.mxu0 0.0
    %357 = vmatprep.subr.mxu0 0.0
    %358 = vmatpush1.msra.mxu0 0.0
    %359 = vmatprep.subr.mxu0 0.0
    %360 = vmatpush1.msra.mxu0 0.0
    %361 = vmatprep.subr.mxu0 0.0
    %362 = vmatpush1.msra.mxu0 0.0
    %363 = vmatprep.subr.mxu0 0.0
    %364 = vmatpush1.msra.mxu0 0.0
    %365 = vmatprep.subr.mxu0 0.0
    %366 = vmatpush1.msra.mxu0 0.0
    %367 = vmatprep.subr.mxu0 0.0
    %368 = vmatpush1.msra.mxu0 0.0
    %369 = vmatprep.subr.mxu0 0.0
    %370 = vmatpush1.msra.mxu0 0.0
    %371 = vmatprep.subr.mxu0 0.0
    %372 = vmatpush1.msra.mxu0 0.0
    %373 = vmatprep.subr.mxu0 0.0
    %374 = vmatpush1.msra.mxu0 0.0
    %375 = vmatprep.subr.mxu0 0.0
    %376 = vmatpush1.msra.mxu0 0.0
    %377 = vmatprep.subr.mxu0 0.0
    %378 = vmatpush1.msra.mxu0 0.0
    %379 = vmatprep.subr.mxu0 0.0
    %380 = vmatpush1.msra.mxu0 0.0
    %381 = vmatprep.subr.mxu0 0.0
    %382 = vmatpush1.msra.mxu0 0.0
    %383 = vmatprep.subr.mxu0 0.0
    %384 = vmatpush1.msra.mxu0 0.0
    %385 = vmatprep.subr.mxu0 0.0
    %386 = vmatpush1.msra.mxu0 0.0
    %387 = vmatprep.subr.mxu0 0.0
    %388 = vmatpush1.msra.mxu0 0.0
    %389 = vmatprep.subr.mxu0 0.0
    %390 = vmatpush1.msra.mxu0 0.0
    %391 = vmatprep.subr.mxu0 0.0
    %392 = vmatpush1.msra.mxu0 0.0
    %393 = vmatprep.subr.mxu0 0.0
    %394 = vmatpush1.msra.mxu0 0.0
    %395 = vmatprep.subr.mxu0 0.0
    %396 = vmatpush1.msra.mxu0 0.0
    %397 = vmatprep.subr.mxu0 0.0
    %398 = vmatpush1.msra.mxu0 0.0
    %399 = vmatprep.subr.mxu0 0.0
    %400 = vmatpush1.msra.mxu0 0.0
    %401 = vmatprep.mubr.f32.mxu0 0.0
    %402 = vmatmul.mubr.f32.gmra.mrb[0].mxu0 %v335
    %v403 = vpop.f32.mrb[0].mxu0
    %v404 = vadd.f32 0.0, %v403
    %v405 = vpop.f32.mrb[0].mxu0
    %v406 = vadd.f32 0.0, %v405
    %407 = vdwg.mxu0
    %v409 = vrot.slane %v404, 6
    %v411 = vadd.f32 %v199, %v409
    %v412 = vmul.f32 %v411, 0.5
    %v413 = vtanh.pop %v412
    %v414 = vadd.f32 %v413, 1.0
    %v415 = vmul.f32 %v414, 0.5
    %v416 = vadd.f32 %v406, %v230
    %v418 = vrot.slane %v416, 6
    %v420 = vmul.f32 %v415, %v418
    %v421 = vadd.f32 %v201, %v420
    %v422 = vtanh.pop %v421
    %v423 = vsub.f32 1.0, %v415
    %425 = vrot.lane.b32.xlu0 %v422, 64
    %v426 = vpop.permute.xlu0 %425
    %v428 = vmul.f32 %v423, %v426
    %v429 = vrot.slane %v326, 6
    %v431 = vmul.f32 %v415, %v429
    %v432 = vadd.f32 %v428, %v431
    %434 = vrot.lane.b32.xlu0 %v432, 64
    %v435 = vpop.permute.xlu0 %434
    %vm437 = vcmask 257026
    %438 = vst.msk [vmem:[#allocation2] sm:$0xc] %vm437, %v435
    %vm439 = vcmask 519426
    %440 = vst.msk [vmem:[#allocation2 + $0xa] sm:$0xc] %vm439, %v435
    %v441 = vrot.slane %v432, 2
    %442 = vrot.lane.b32.xlu0 %v441, 64
    %v443 = vpop.permute.xlu0 %442
    %v444 = vsel %vm125, %v443, 0
    %446 = vmatprep.subr.mxu0 %v210
    %447 = vmatpush1.msra.mxu0 %v209
    %448 = vmatprep.subr.mxu0 %v212
    %449 = vmatpush1.msra.mxu0 %v211
    %450 = vmatprep.subr.mxu0 %v214
    %451 = vmatpush1.msra.mxu0 %v213
    %452 = vmatprep.subr.mxu0 %v216
    %453 = vmatpush1.msra.mxu0 %v215
    %454 = vmatprep.subr.mxu0 %v218
    %455 = vmatpush1.msra.mxu0 %v217
    %456 = vmatprep.subr.mxu0 %v220
    %457 = vmatpush1.msra.mxu0 %v219
    %458 = vmatprep.subr.mxu0 %v222
    %459 = vmatpush1.msra.mxu0 %v221
    %460 = vmatprep.subr.mxu0 %v224
    %461 = vmatpush1.msra.mxu0 %v223
    %462 = vmatprep.subr.mxu0 0.0
    %463 = vmatpush1.msra.mxu0 0.0
    %464 = vmatprep.subr.mxu0 0.0
    %465 = vmatpush1.msra.mxu0 0.0
    %466 = vmatprep.subr.mxu0 0.0
    %467 = vmatpush1.msra.mxu0 0.0
    %468 = vmatprep.subr.mxu0 0.0
    %469 = vmatpush1.msra.mxu0 0.0
    %470 = vmatprep.subr.mxu0 0.0
    %471 = vmatpush1.msra.mxu0 0.0
    %472 = vmatprep.subr.mxu0 0.0
    %473 = vmatpush1.msra.mxu0 0.0
    %474 = vmatprep.subr.mxu0 0.0
    %475 = vmatpush1.msra.mxu0 0.0
    %476 = vmatprep.subr.mxu0 0.0
    %477 = vmatpush1.msra.mxu0 0.0
    %478 = vmatprep.subr.mxu0 0.0
    %479 = vmatpush1.msra.mxu0 0.0
    %480 = vmatprep.subr.mxu0 0.0
    %481 = vmatpush1.msra.mxu0 0.0
    %482 = vmatprep.subr.mxu0 0.0
    %483 = vmatpush1.msra.mxu0 0.0
    %484 = vmatprep.subr.mxu0 0.0
    %485 = vmatpush1.msra.mxu0 0.0
    %486 = vmatprep.subr.mxu0 0.0
    %487 = vmatpush1.msra.mxu0 0.0
    %488 = vmatprep.subr.mxu0 0.0
    %489 = vmatpush1.msra.mxu0 0.0
    %490 = vmatprep.subr.mxu0 0.0
    %491 = vmatpush1.msra.mxu0 0.0
    %492 = vmatprep.subr.mxu0 0.0
    %493 = vmatpush1.msra.mxu0 0.0
    %494 = vmatprep.subr.mxu0 0.0
    %495 = vmatpush1.msra.mxu0 0.0
    %496 = vmatprep.subr.mxu0 0.0
    %497 = vmatpush1.msra.mxu0 0.0
    %498 = vmatprep.subr.mxu0 0.0
    %499 = vmatpush1.msra.mxu0 0.0
    %500 = vmatprep.subr.mxu0 0.0
    %501 = vmatpush1.msra.mxu0 0.0
    %502 = vmatprep.subr.mxu0 0.0
    %503 = vmatpush1.msra.mxu0 0.0
    %504 = vmatprep.subr.mxu0 0.0
    %505 = vmatpush1.msra.mxu0 0.0
    %506 = vmatprep.subr.mxu0 0.0
    %507 = vmatpush1.msra.mxu0 0.0
    %508 = vmatprep.subr.mxu0 0.0
    %509 = vmatpush1.msra.mxu0 0.0
    %510 = vmatprep.mubr.f32.mxu0 0.0
    %511 = vmatmul.mubr.f32.gmra.mrb[0].mxu0 %v444
    %v512 = vpop.f32.mrb[0].mxu0
    %v513 = vadd.f32 0.0, %v512
    %v514 = vpop.f32.mrb[0].mxu0
    %v515 = vadd.f32 0.0, %v514
    %516 = vdwg.mxu0
    %v518 = vrot.slane %v513, 4
    %v520 = vadd.f32 %v199, %v518
    %v521 = vmul.f32 %v520, 0.5
    %v522 = vtanh.pop %v521
    %v523 = vadd.f32 %v522, 1.0
    %v524 = vmul.f32 %v523, 0.5
    %v525 = vadd.f32 %v515, %v230
    %v527 = vrot.slane %v525, 4
    %v529 = vmul.f32 %v524, %v527
    %v530 = vadd.f32 %v201, %v529
    %v531 = vtanh.pop %v530
    %v532 = vsub.f32 1.0, %v524
    %534 = vrot.lane.b32.xlu0 %v531, 64
    %v535 = vpop.permute.xlu0 %534
    %v537 = vmul.f32 %v532, %v535
    %v538 = vrot.slane %v432, 6
    %v540 = vmul.f32 %v524, %v538
    %v541 = vadd.f32 %v537, %v540
    %543 = vrot.lane.b32.xlu0 %v541, 64
    %v544 = vpop.permute.xlu0 %543
    %vm546 = vcmask 259076
    %547 = vst.msk [vmem:[#allocation2] sm:$0x30] %vm546, %v544
    %vm548 = vcmask 521476
    %549 = vst.msk [vmem:[#allocation2 + $0x6] sm:$0x30] %vm548, %v544
    %v550 = vrot.slane %v541, 4
    %551 = vrot.lane.b32.xlu0 %v550, 64
    %v552 = vpop.permute.xlu0 %551
    %v553 = vsel %vm125, %v552, 0
    %555 = vmatprep.subr.mxu0 %v210
    %556 = vmatpush1.msra.mxu0 %v209
    %557 = vmatprep.subr.mxu0 %v212
    %558 = vmatpush1.msra.mxu0 %v211
    %559 = vmatprep.subr.mxu0 %v214
    %560 = vmatpush1.msra.mxu0 %v213
    %561 = vmatprep.subr.mxu0 %v216
    %562 = vmatpush1.msra.mxu0 %v215
    %563 = vmatprep.subr.mxu0 %v218
    %564 = vmatpush1.msra.mxu0 %v217
    %565 = vmatprep.subr.mxu0 %v220
    %566 = vmatpush1.msra.mxu0 %v219
    %567 = vmatprep.subr.mxu0 %v222
    %568 = vmatpush1.msra.mxu0 %v221
    %569 = vmatprep.subr.mxu0 %v224
    %570 = vmatpush1.msra.mxu0 %v223
    %571 = vmatprep.subr.mxu0 0.0
    %572 = vmatpush1.msra.mxu0 0.0
    %573 = vmatprep.subr.mxu0 0.0
    %574 = vmatpush1.msra.mxu0 0.0
    %575 = vmatprep.subr.mxu0 0.0
    %576 = vmatpush1.msra.mxu0 0.0
    %577 = vmatprep.subr.mxu0 0.0
    %578 = vmatpush1.msra.mxu0 0.0
    %579 = vmatprep.subr.mxu0 0.0
    %580 = vmatpush1.msra.mxu0 0.0
    %581 = vmatprep.subr.mxu0 0.0
    %582 = vmatpush1.msra.mxu0 0.0
    %583 = vmatprep.subr.mxu0 0.0
    %584 = vmatpush1.msra.mxu0 0.0
    %585 = vmatprep.subr.mxu0 0.0
    %586 = vmatpush1.msra.mxu0 0.0
    %587 = vmatprep.subr.mxu0 0.0
    %588 = vmatpush1.msra.mxu0 0.0
    %589 = vmatprep.subr.mxu0 0.0
    %590 = vmatpush1.msra.mxu0 0.0
    %591 = vmatprep.subr.mxu0 0.0
    %592 = vmatpush1.msra.mxu0 0.0
    %593 = vmatprep.subr.mxu0 0.0
    %594 = vmatpush1.msra.mxu0 0.0
    %595 = vmatprep.subr.mxu0 0.0
    %596 = vmatpush1.msra.mxu0 0.0
    %597 = vmatprep.subr.mxu0 0.0
    %598 = vmatpush1.msra.mxu0 0.0
    %599 = vmatprep.subr.mxu0 0.0
    %600 = vmatpush1.msra.mxu0 0.0
    %601 = vmatprep.subr.mxu0 0.0
    %602 = vmatpush1.msra.mxu0 0.0
    %603 = vmatprep.subr.mxu0 0.0
    %604 = vmatpush1.msra.mxu0 0.0
    %605 = vmatprep.subr.mxu0 0.0
    %606 = vmatpush1.msra.mxu0 0.0
    %607 = vmatprep.subr.mxu0 0.0
    %608 = vmatpush1.msra.mxu0 0.0
    %609 = vmatprep.subr.mxu0 0.0
    %610 = vmatpush1.msra.mxu0 0.0
    %611 = vmatprep.subr.mxu0 0.0
    %612 = vmatpush1.msra.mxu0 0.0
    %613 = vmatprep.subr.mxu0 0.0
    %614 = vmatpush1.msra.mxu0 0.0
    %615 = vmatprep.subr.mxu0 0.0
    %616 = vmatpush1.msra.mxu0 0.0
    %617 = vmatprep.subr.mxu0 0.0
    %618 = vmatpush1.msra.mxu0 0.0
    %619 = vmatprep.mubr.f32.mxu0 0.0
    %620 = vmatmul.mubr.f32.gmra.mrb[0].mxu0 %v553
    %v621 = vpop.f32.mrb[0].mxu0
    %v622 = vadd.f32 0.0, %v621
    %v623 = vpop.f32.mrb[0].mxu0
    %v624 = vadd.f32 0.0, %v623
    %625 = vdwg.mxu0
    %v627 = vrot.slane %v622, 2
    %v629 = vadd.f32 %v199, %v627
    %v630 = vmul.f32 %v629, 0.5
    %v631 = vtanh.pop %v630
    %v632 = vadd.f32 %v631, 1.0
    %v633 = vmul.f32 %v632, 0.5
    %v634 = vadd.f32 %v624, %v230
    %v636 = vrot.slane %v634, 2
    %v638 = vmul.f32 %v633, %v636
    %v639 = vadd.f32 %v201, %v638
    %v640 = vtanh.pop %v639
    %v641 = vsub.f32 1.0, %v633
    %643 = vrot.lane.b32.xlu0 %v640, 64
    %v644 = vpop.permute.xlu0 %643
    %v646 = vmul.f32 %v641, %v644
    %v647 = vrot.slane %v541, 6
    %v649 = vmul.f32 %v633, %v647
    %v650 = vadd.f32 %v646, %v649
    %652 = vrot.lane.b32.xlu0 %v650, 64
    %v653 = vpop.permute.xlu0 %652
    %vm655 = vcmask 261126
    %656 = vst.msk [vmem:[#allocation2] sm:$0xc0] %vm655, %v653
    %vm657 = vcmask 523526
    %658 = vst.msk [vmem:[#allocation2 + $0x2] sm:$0xc0] %vm657, %v653
    %v659 = vrot.slane %v650, 6
    %660 = vrot.lane.b32.xlu0 %v659, 64
    %v661 = vpop.permute.xlu0 %660
    %v662 = vsel %vm125, %v661, 0
    %664 = vmatprep.subr.mxu0 %v210
    %665 = vmatpush1.msra.mxu0 %v209
    %666 = vmatprep.subr.mxu0 %v212
    %667 = vmatpush1.msra.mxu0 %v211
    %668 = vmatprep.subr.mxu0 %v214
    %669 = vmatpush1.msra.mxu0 %v213
    %670 = vmatprep.subr.mxu0 %v216
    %671 = vmatpush1.msra.mxu0 %v215
    %672 = vmatprep.subr.mxu0 %v218
    %673 = vmatpush1.msra.mxu0 %v217
    %674 = vmatprep.subr.mxu0 %v220
    %675 = vmatpush1.msra.mxu0 %v219
    %676 = vmatprep.subr.mxu0 %v222
    %677 = vmatpush1.msra.mxu0 %v221
    %678 = vmatprep.subr.mxu0 %v224
    %679 = vmatpush1.msra.mxu0 %v223
    %680 = vmatprep.subr.mxu0 0.0
    %681 = vmatpush1.msra.mxu0 0.0
    %682 = vmatprep.subr.mxu0 0.0
    %683 = vmatpush1.msra.mxu0 0.0
    %684 = vmatprep.subr.mxu0 0.0
    %685 = vmatpush1.msra.mxu0 0.0
    %686 = vmatprep.subr.mxu0 0.0
    %687 = vmatpush1.msra.mxu0 0.0
    %688 = vmatprep.subr.mxu0 0.0
    %689 = vmatpush1.msra.mxu0 0.0
    %690 = vmatprep.subr.mxu0 0.0
    %691 = vmatpush1.msra.mxu0 0.0
    %692 = vmatprep.subr.mxu0 0.0
    %693 = vmatpush1.msra.mxu0 0.0
    %694 = vmatprep.subr.mxu0 0.0
    %695 = vmatpush1.msra.mxu0 0.0
    %696 = vmatprep.subr.mxu0 0.0
    %697 = vmatpush1.msra.mxu0 0.0
    %698 = vmatprep.subr.mxu0 0.0
    %699 = vmatpush1.msra.mxu0 0.0
    %700 = vmatprep.subr.mxu0 0.0
    %701 = vmatpush1.msra.mxu0 0.0
    %702 = vmatprep.subr.mxu0 0.0
    %703 = vmatpush1.msra.mxu0 0.0
    %704 = vmatprep.subr.mxu0 0.0
    %705 = vmatpush1.msra.mxu0 0.0
    %706 = vmatprep.subr.mxu0 0.0
    %707 = vmatpush1.msra.mxu0 0.0
    %708 = vmatprep.subr.mxu0 0.0
    %709 = vmatpush1.msra.mxu0 0.0
    %710 = vmatprep.subr.mxu0 0.0
    %711 = vmatpush1.msra.mxu0 0.0
    %712 = vmatprep.subr.mxu0 0.0
    %713 = vmatpush1.msra.mxu0 0.0
    %714 = vmatprep.subr.mxu0 0.0
    %715 = vmatpush1.msra.mxu0 0.0
    %716 = vmatprep.subr.mxu0 0.0
    %717 = vmatpush1.msra.mxu0 0.0
    %718 = vmatprep.subr.mxu0 0.0
    %719 = vmatpush1.msra.mxu0 0.0
    %720 = vmatprep.subr.mxu0 0.0
    %721 = vmatpush1.msra.mxu0 0.0
    %722 = vmatprep.subr.mxu0 0.0
    %723 = vmatpush1.msra.mxu0 0.0
    %724 = vmatprep.subr.mxu0 0.0
    %725 = vmatpush1.msra.mxu0 0.0
    %726 = vmatprep.subr.mxu0 0.0
    %727 = vmatpush1.msra.mxu0 0.0
    %728 = vmatprep.mubr.f32.mxu0 0.0
    %729 = vmatmul.mubr.f32.gmra.mrb[0].mxu0 %v662
    %v730 = vpop.f32.mrb[0].mxu0
    %v731 = vadd.f32 0.0, %v730
    %v732 = vpop.f32.mrb[0].mxu0
    %v733 = vadd.f32 0.0, %v732
    %734 = vdwg.mxu0
    %v735 = vadd.f32 %v205, %v731
    %v736 = vmul.f32 %v735, 0.5
    %v737 = vtanh.pop %v736
    %v738 = vadd.f32 %v737, 1.0
    %v739 = vmul.f32 %v738, 0.5
    %v740 = vadd.f32 %v733, %v230
    %v741 = vmul.f32 %v739, %v740
    %v742 = vadd.f32 %v207, %v741
    %v743 = vtanh.pop %v742
    %v744 = vsub.f32 1.0, %v739
    %746 = vrot.lane.b32.xlu0 %v743, 64
    %v747 = vpop.permute.xlu0 %746
    %v749 = vmul.f32 %v744, %v747
    %v751 = vmul.f32 %v739, %v659
    %v752 = vadd.f32 %v749, %v751
    %754 = vrot.lane.b32.xlu0 %v752, 64
    %v755 = vpop.permute.xlu0 %754
    %757 = vst.msk [vmem:[#allocation2 + $0x8] sm:$0x3] %vm331, %v755
    %758 = vst.msk [vmem:[#allocation2 + $0x6] sm:$0x3] %vm333, %v755
    %v759 = vsel %vm125, %v755, 0
    %761 = vmatprep.subr.mxu0 %v210
    %762 = vmatpush1.msra.mxu0 %v209
    %763 = vmatprep.subr.mxu0 %v212
    %764 = vmatpush1.msra.mxu0 %v211
    %765 = vmatprep.subr.mxu0 %v214
    %766 = vmatpush1.msra.mxu0 %v213
    %767 = vmatprep.subr.mxu0 %v216
    %768 = vmatpush1.msra.mxu0 %v215
    %769 = vmatprep.subr.mxu0 %v218
    %770 = vmatpush1.msra.mxu0 %v217
    %771 = vmatprep.subr.mxu0 %v220
    %772 = vmatpush1.msra.mxu0 %v219
    %773 = vmatprep.subr.mxu0 %v222
    %774 = vmatpush1.msra.mxu0 %v221
    %775 = vmatprep.subr.mxu0 %v224
    %776 = vmatpush1.msra.mxu0 %v223
    %777 = vmatprep.subr.mxu0 0.0
    %778 = vmatpush1.msra.mxu0 0.0
    %779 = vmatprep.subr.mxu0 0.0
    %780 = vmatpush1.msra.mxu0 0.0
    %781 = vmatprep.subr.mxu0 0.0
    %782 = vmatpush1.msra.mxu0 0.0
    %783 = vmatprep.subr.mxu0 0.0
    %784 = vmatpush1.msra.mxu0 0.0
    %785 = vmatprep.subr.mxu0 0.0
    %786 = vmatpush1.msra.mxu0 0.0
    %787 = vmatprep.subr.mxu0 0.0
    %788 = vmatpush1.msra.mxu0 0.0
    %789 = vmatprep.subr.mxu0 0.0
    %790 = vmatpush1.msra.mxu0 0.0
    %791 = vmatprep.subr.mxu0 0.0
    %792 = vmatpush1.msra.mxu0 0.0
    %793 = vmatprep.subr.mxu0 0.0
    %794 = vmatpush1.msra.mxu0 0.0
    %795 = vmatprep.subr.mxu0 0.0
    %796 = vmatpush1.msra.mxu0 0.0
    %797 = vmatprep.subr.mxu0 0.0
    %798 = vmatpush1.msra.mxu0 0.0
    %799 = vmatprep.subr.mxu0 0.0
    %800 = vmatpush1.msra.mxu0 0.0
    %801 = vmatprep.subr.mxu0 0.0
    %802 = vmatpush1.msra.mxu0 0.0
    %803 = vmatprep.subr.mxu0 0.0
    %804 = vmatpush1.msra.mxu0 0.0
    %805 = vmatprep.subr.mxu0 0.0
    %806 = vmatpush1.msra.mxu0 0.0
    %807 = vmatprep.subr.mxu0 0.0
    %808 = vmatpush1.msra.mxu0 0.0
    %809 = vmatprep.subr.mxu0 0.0
    %810 = vmatpush1.msra.mxu0 0.0
    %811 = vmatprep.subr.mxu0 0.0
    %812 = vmatpush1.msra.mxu0 0.0
    %813 = vmatprep.subr.mxu0 0.0
    %814 = vmatpush1.msra.mxu0 0.0
    %815 = vmatprep.subr.mxu0 0.0
    %816 = vmatpush1.msra.mxu0 0.0
    %817 = vmatprep.subr.mxu0 0.0
    %818 = vmatpush1.msra.mxu0 0.0
    %819 = vmatprep.subr.mxu0 0.0
    %820 = vmatpush1.msra.mxu0 0.0
    %821 = vmatprep.subr.mxu0 0.0
    %822 = vmatpush1.msra.mxu0 0.0
    %823 = vmatprep.subr.mxu0 0.0
    %824 = vmatpush1.msra.mxu0 0.0
    %825 = vmatprep.mubr.f32.mxu0 0.0
    %826 = vmatmul.mubr.f32.gmra.mrb[0].mxu0 %v759
    %v827 = vpop.f32.mrb[0].mxu0
    %v828 = vadd.f32 0.0, %v827
    %v829 = vpop.f32.mrb[0].mxu0
    %v830 = vadd.f32 0.0, %v829
    %831 = vdwg.mxu0
    %v833 = vrot.slane %v828, 6
    %v835 = vadd.f32 %v205, %v833
    %v836 = vmul.f32 %v835, 0.5
    %v837 = vtanh.pop %v836
    %v838 = vadd.f32 %v837, 1.0
    %v839 = vmul.f32 %v838, 0.5
    %v840 = vadd.f32 %v830, %v230
    %v842 = vrot.slane %v840, 6
    %v844 = vmul.f32 %v839, %v842
    %v845 = vadd.f32 %v207, %v844
    %v846 = vtanh.pop %v845
    %v847 = vsub.f32 1.0, %v839
    %849 = vrot.lane.b32.xlu0 %v846, 64
    %v850 = vpop.permute.xlu0 %849
    %v852 = vmul.f32 %v847, %v850
    %v853 = vrot.slane %v752, 6
    %v855 = vmul.f32 %v839, %v853
    %v856 = vadd.f32 %v852, %v855
    %858 = vrot.lane.b32.xlu0 %v856, 64
    %v859 = vpop.permute.xlu0 %858
    %861 = vst.msk [vmem:[#allocation2 + $0x8] sm:$0xc] %vm437, %v859
    %862 = vst.msk [vmem:[#allocation2 + $0x2] sm:$0xc] %vm439, %v859
    %v863 = vrot.slane %v856, 2
    %864 = vrot.lane.b32.xlu0 %v863, 64
    %v865 = vpop.permute.xlu0 %864
    %v866 = vsel %vm125, %v865, 0
    %868 = vmatprep.subr.mxu0 %v210
    %869 = vmatpush1.msra.mxu0 %v209
    %870 = vmatprep.subr.mxu0 %v212
    %871 = vmatpush1.msra.mxu0 %v211
    %872 = vmatprep.subr.mxu0 %v214
    %873 = vmatpush1.msra.mxu0 %v213
    %874 = vmatprep.subr.mxu0 %v216
    %875 = vmatpush1.msra.mxu0 %v215
    %876 = vmatprep.subr.mxu0 %v218
    %877 = vmatpush1.msra.mxu0 %v217
    %878 = vmatprep.subr.mxu0 %v220
    %879 = vmatpush1.msra.mxu0 %v219
    %880 = vmatprep.subr.mxu0 %v222
    %881 = vmatpush1.msra.mxu0 %v221
    %882 = vmatprep.subr.mxu0 %v224
    %883 = vmatpush1.msra.mxu0 %v223
    %884 = vmatprep.subr.mxu0 0.0
    %885 = vmatpush1.msra.mxu0 0.0
    %886 = vmatprep.subr.mxu0 0.0
    %887 = vmatpush1.msra.mxu0 0.0
    %888 = vmatprep.subr.mxu0 0.0
    %889 = vmatpush1.msra.mxu0 0.0
    %890 = vmatprep.subr.mxu0 0.0
    %891 = vmatpush1.msra.mxu0 0.0
    %892 = vmatprep.subr.mxu0 0.0
    %893 = vmatpush1.msra.mxu0 0.0
    %894 = vmatprep.subr.mxu0 0.0
    %895 = vmatpush1.msra.mxu0 0.0
    %896 = vmatprep.subr.mxu0 0.0
    %897 = vmatpush1.msra.mxu0 0.0
    %898 = vmatprep.subr.mxu0 0.0
    %899 = vmatpush1.msra.mxu0 0.0
    %900 = vmatprep.subr.mxu0 0.0
    %901 = vmatpush1.msra.mxu0 0.0
    %902 = vmatprep.subr.mxu0 0.0
    %903 = vmatpush1.msra.mxu0 0.0
    %904 = vmatprep.subr.mxu0 0.0
    %905 = vmatpush1.msra.mxu0 0.0
    %906 = vmatprep.subr.mxu0 0.0
    %907 = vmatpush1.msra.mxu0 0.0
    %908 = vmatprep.subr.mxu0 0.0
    %909 = vmatpush1.msra.mxu0 0.0
    %910 = vmatprep.subr.mxu0 0.0
    %911 = vmatpush1.msra.mxu0 0.0
    %912 = vmatprep.subr.mxu0 0.0
    %913 = vmatpush1.msra.mxu0 0.0
    %914 = vmatprep.subr.mxu0 0.0
    %915 = vmatpush1.msra.mxu0 0.0
    %916 = vmatprep.subr.mxu0 0.0
    %917 = vmatpush1.msra.mxu0 0.0
    %918 = vmatprep.subr.mxu0 0.0
    %919 = vmatpush1.msra.mxu0 0.0
    %920 = vmatprep.subr.mxu0 0.0
    %921 = vmatpush1.msra.mxu0 0.0
    %922 = vmatprep.subr.mxu0 0.0
    %923 = vmatpush1.msra.mxu0 0.0
    %924 = vmatprep.subr.mxu0 0.0
    %925 = vmatpush1.msra.mxu0 0.0
    %926 = vmatprep.subr.mxu0 0.0
    %927 = vmatpush1.msra.mxu0 0.0
    %928 = vmatprep.subr.mxu0 0.0
    %929 = vmatpush1.msra.mxu0 0.0
    %930 = vmatprep.subr.mxu0 0.0
    %931 = vmatpush1.msra.mxu0 0.0
    %932 = vmatprep.mubr.f32.mxu0 0.0
    %933 = vmatmul.mubr.f32.gmra.mrb[0].mxu0 %v866
    %v934 = vpop.f32.mrb[0].mxu0
    %v935 = vadd.f32 0.0, %v934
    %v936 = vpop.f32.mrb[0].mxu0
    %v937 = vadd.f32 0.0, %v936
    %938 = vdwg.mxu0
    %v940 = vrot.slane %v935, 4
    %v942 = vadd.f32 %v205, %v940
    %v943 = vmul.f32 %v942, 0.5
    %v944 = vtanh.pop %v943
    %v945 = vadd.f32 %v944, 1.0
    %v946 = vmul.f32 %v945, 0.5
    %v947 = vadd.f32 %v937, %v230
    %v949 = vrot.slane %v947, 4
    %v951 = vmul.f32 %v946, %v949
    %v952 = vadd.f32 %v207, %v951
    %v953 = vtanh.pop %v952
    %v954 = vsub.f32 1.0, %v946
    %956 = vrot.lane.b32.xlu0 %v953, 64
    %v957 = vpop.permute.xlu0 %956
    %v959 = vmul.f32 %v954, %v957
    %v960 = vrot.slane %v856, 6
    %v962 = vmul.f32 %v946, %v960
    %v963 = vadd.f32 %v959, %v962
    %965 = vrot.lane.b32.xlu0 %v963, 64
    %v966 = vpop.permute.xlu0 %965
    %968 = vst.msk [vmem:[#allocation2 + $0x8] sm:$0x30] %vm546, %v966
    %969 = vst.msk [vmem:[#allocation2 - $0x2] sm:$0x30] %vm548, %v966
    %v970 = vrot.slane %v963, 4
    %971 = vrot.lane.b32.xlu0 %v970, 64
    %v972 = vpop.permute.xlu0 %971
    %v973 = vsel %vm125, %v972, 0
    %975 = vmatprep.subr.mxu0 %v210
    %976 = vmatpush1.msra.mxu0 %v209
    %977 = vmatprep.subr.mxu0 %v212
    %978 = vmatpush1.msra.mxu0 %v211
    %979 = vmatprep.subr.mxu0 %v214
    %980 = vmatpush1.msra.mxu0 %v213
    %981 = vmatprep.subr.mxu0 %v216
    %982 = vmatpush1.msra.mxu0 %v215
    %983 = vmatprep.subr.mxu0 %v218
    %984 = vmatpush1.msra.mxu0 %v217
    %985 = vmatprep.subr.mxu0 %v220
    %986 = vmatpush1.msra.mxu0 %v219
    %987 = vmatprep.subr.mxu0 %v222
    %988 = vmatpush1.msra.mxu0 %v221
    %989 = vmatprep.subr.mxu0 %v224
    %990 = vmatpush1.msra.mxu0 %v223
    %991 = vmatprep.subr.mxu0 0.0
    %992 = vmatpush1.msra.mxu0 0.0
    %993 = vmatprep.subr.mxu0 0.0
    %994 = vmatpush1.msra.mxu0 0.0
    %995 = vmatprep.subr.mxu0 0.0
    %996 = vmatpush1.msra.mxu0 0.0
    %997 = vmatprep.subr.mxu0 0.0
    %998 = vmatpush1.msra.mxu0 0.0
    %999 = vmatprep.subr.mxu0 0.0
    %1000 = vmatpush1.msra.mxu0 0.0
    %1001 = vmatprep.subr.mxu0 0.0
    %1002 = vmatpush1.msra.mxu0 0.0
    %1003 = vmatprep.subr.mxu0 0.0
    %1004 = vmatpush1.msra.mxu0 0.0
    %1005 = vmatprep.subr.mxu0 0.0
    %1006 = vmatpush1.msra.mxu0 0.0
    %1007 = vmatprep.subr.mxu0 0.0
    %1008 = vmatpush1.msra.mxu0 0.0
    %1009 = vmatprep.subr.mxu0 0.0
    %1010 = vmatpush1.msra.mxu0 0.0
    %1011 = vmatprep.subr.mxu0 0.0
    %1012 = vmatpush1.msra.mxu0 0.0
    %1013 = vmatprep.subr.mxu0 0.0
    %1014 = vmatpush1.msra.mxu0 0.0
    %1015 = vmatprep.subr.mxu0 0.0
    %1016 = vmatpush1.msra.mxu0 0.0
    %1017 = vmatprep.subr.mxu0 0.0
    %1018 = vmatpush1.msra.mxu0 0.0
    %1019 = vmatprep.subr.mxu0 0.0
    %1020 = vmatpush1.msra.mxu0 0.0
    %1021 = vmatprep.subr.mxu0 0.0
    %1022 = vmatpush1.msra.mxu0 0.0
    %1023 = vmatprep.subr.mxu0 0.0
    %1024 = vmatpush1.msra.mxu0 0.0
    %1025 = vmatprep.subr.mxu0 0.0
    %1026 = vmatpush1.msra.mxu0 0.0
    %1027 = vmatprep.subr.mxu0 0.0
    %1028 = vmatpush1.msra.mxu0 0.0
    %1029 = vmatprep.subr.mxu0 0.0
    %1030 = vmatpush1.msra.mxu0 0.0
    %1031 = vmatprep.subr.mxu0 0.0
    %1032 = vmatpush1.msra.mxu0 0.0
    %1033 = vmatprep.subr.mxu0 0.0
    %1034 = vmatpush1.msra.mxu0 0.0
    %1035 = vmatprep.subr.mxu0 0.0
    %1036 = vmatpush1.msra.mxu0 0.0
    %1037 = vmatprep.subr.mxu0 0.0
    %1038 = vmatpush1.msra.mxu0 0.0
    %1039 = vmatprep.mubr.f32.mxu0 0.0
    %1040 = vmatmul.mubr.f32.gmra.mrb[0].mxu0 %v973
    %v1041 = vpop.f32.mrb[0].mxu0
    %v1042 = vadd.f32 0.0, %v1041
    %v1043 = vpop.f32.mrb[0].mxu0
    %v1044 = vadd.f32 0.0, %v1043
    %1045 = vdwg.mxu0
    %v1047 = vrot.slane %v1042, 2
    %v1049 = vadd.f32 %v205, %v1047
    %v1050 = vmul.f32 %v1049, 0.5
    %v1051 = vtanh.pop %v1050
    %v1052 = vadd.f32 %v1051, 1.0
    %v1053 = vmul.f32 %v1052, 0.5
    %v1054 = vadd.f32 %v1044, %v230
    %v1056 = vrot.slane %v1054, 2
    %v1058 = vmul.f32 %v1053, %v1056
    %v1059 = vadd.f32 %v207, %v1058
    %v1060 = vtanh.pop %v1059
    %v1061 = vsub.f32 1.0, %v1053
    %1063 = vrot.lane.b32.xlu0 %v1060, 64
    %v1064 = vpop.permute.xlu0 %1063
    %v1066 = vmul.f32 %v1061, %v1064
    %v1067 = vrot.slane %v963, 6
    %v1069 = vmul.f32 %v1053, %v1067
    %v1070 = vadd.f32 %v1066, %v1069
    %1072 = vrot.lane.b32.xlu0 %v1070, 64
    %v1073 = vpop.permute.xlu0 %1072
    %1075 = vst.msk [vmem:[#allocation2 + $0x8] sm:$0xc0] %vm655, %v1073
    %1076 = vst.msk [vmem:[#allocation2 - $0x6] sm:$0xc0] %vm657, %v1073
    %v1077 = vld [vmem:[#allocation2] sm:$0xff]
    %v1078 = vld [vmem:[#allocation2 + $0x8] sm:$0xff]
    %v1079 = vld [vmem:[#allocation9] sm:$0xff]
    %v1080 = vld [vmem:[#allocation9 + $0x8] sm:$0xff]
    %v1081 = vld [vmem:[#allocation9 + $0x10] sm:$0xff]
    %v1082 = vld [vmem:[#allocation9 + $0x18] sm:$0xff]
    %v1083 = vld [vmem:[#allocation9 + $0x20] sm:$0xff]
    %v1084 = vld [vmem:[#allocation9 + $0x28] sm:$0xff]
    %v1085 = vld [vmem:[#allocation9 + $0x30] sm:$0xff]
    %v1086 = vld [vmem:[#allocation9 + $0x38] sm:$0xff]
    %v1087 = vld [vmem:[#allocation9 + $0x40] sm:$0xff]
    %v1088 = vld [vmem:[#allocation9 + $0x48] sm:$0xff]
    %v1089 = vld [vmem:[#allocation9 + $0x50] sm:$0xff]
    %v1090 = vld [vmem:[#allocation9 + $0x58] sm:$0xff]
    %v1091 = vld [vmem:[#allocation9 + $0x60] sm:$0xff]
    %v1092 = vld [vmem:[#allocation9 + $0x68] sm:$0xff]
    %v1093 = vld [vmem:[#allocation9 + $0x70] sm:$0xff]
    %v1094 = vld [vmem:[#allocation9 + $0x78] sm:$0xff]
    %v1095 = vld [vmem:[%s7] sm:$0x3]
    %v1097 = vlaneseq
    %v1098 = vshrl.u32 %v1097, 7
    %v1099 = vsub.s32 0, %v1098
    %v1100 = vrot.slane %v1095, %v1099
    %v1101 = vlaneseq
    %v1102 = vshrl.u32 %v1101, 7
    %v1103 = vsub.s32 1, %v1102
    %v1104 = vrot.slane %v1095, %v1103
    %v1108 = vsel %vm125, %v1077, 0
    %v1111 = vsel %vm125, %v1078, 0
    %1113 = vmatprep.subr.mxu0 %v1080
    %1114 = vmatpush1.msra.mxu0 %v1079
    %1115 = vmatprep.subr.mxu0 %v1082
    %1116 = vmatpush1.msra.mxu0 %v1081
    %1117 = vmatprep.subr.mxu0 %v1084
    %1118 = vmatpush1.msra.mxu0 %v1083
    %1119 = vmatprep.subr.mxu0 %v1086
    %1120 = vmatpush1.msra.mxu0 %v1085
    %1121 = vmatprep.subr.mxu0 %v1088
    %1122 = vmatpush1.msra.mxu0 %v1087
    %1123 = vmatprep.subr.mxu0 %v1090
    %1124 = vmatpush1.msra.mxu0 %v1089
    %1125 = vmatprep.subr.mxu0 %v1092
    %1126 = vmatpush1.msra.mxu0 %v1091
    %1127 = vmatprep.subr.mxu0 %v1094
    %1128 = vmatpush1.msra.mxu0 %v1093
    %1129 = vmatprep.subr.mxu0 0.0
    %1130 = vmatpush1.msra.mxu0 0.0
    %1131 = vmatprep.subr.mxu0 0.0
    %1132 = vmatpush1.msra.mxu0 0.0
    %1133 = vmatprep.subr.mxu0 0.0
    %1134 = vmatpush1.msra.mxu0 0.0
    %1135 = vmatprep.subr.mxu0 0.0
    %1136 = vmatpush1.msra.mxu0 0.0
    %1137 = vmatprep.subr.mxu0 0.0
    %1138 = vmatpush1.msra.mxu0 0.0
    %1139 = vmatprep.subr.mxu0 0.0
    %1140 = vmatpush1.msra.mxu0 0.0
    %1141 = vmatprep.subr.mxu0 0.0
    %1142 = vmatpush1.msra.mxu0 0.0
    %1143 = vmatprep.subr.mxu0 0.0
    %1144 = vmatpush1.msra.mxu0 0.0
    %1145 = vmatprep.subr.mxu0 0.0
    %1146 = vmatpush1.msra.mxu0 0.0
    %1147 = vmatprep.subr.mxu0 0.0
    %1148 = vmatpush1.msra.mxu0 0.0
    %1149 = vmatprep.subr.mxu0 0.0
    %1150 = vmatpush1.msra.mxu0 0.0
    %1151 = vmatprep.subr.mxu0 0.0
    %1152 = vmatpush1.msra.mxu0 0.0
    %1153 = vmatprep.subr.mxu0 0.0
    %1154 = vmatpush1.msra.mxu0 0.0
    %1155 = vmatprep.subr.mxu0 0.0
    %1156 = vmatpush1.msra.mxu0 0.0
    %1157 = vmatprep.subr.mxu0 0.0
    %1158 = vmatpush1.msra.mxu0 0.0
    %1159 = vmatprep.subr.mxu0 0.0
    %1160 = vmatpush1.msra.mxu0 0.0
    %1161 = vmatprep.subr.mxu0 0.0
    %1162 = vmatpush1.msra.mxu0 0.0
    %1163 = vmatprep.subr.mxu0 0.0
    %1164 = vmatpush1.msra.mxu0 0.0
    %1165 = vmatprep.subr.mxu0 0.0
    %1166 = vmatpush1.msra.mxu0 0.0
    %1167 = vmatprep.subr.mxu0 0.0
    %1168 = vmatpush1.msra.mxu0 0.0
    %1169 = vmatprep.subr.mxu0 0.0
    %1170 = vmatpush1.msra.mxu0 0.0
    %1171 = vmatprep.subr.mxu0 0.0
    %1172 = vmatpush1.msra.mxu0 0.0
    %1173 = vmatprep.subr.mxu0 0.0
    %1174 = vmatpush1.msra.mxu0 0.0
    %1175 = vmatprep.subr.mxu0 0.0
    %1176 = vmatpush1.msra.mxu0 0.0
    %1177 = vmatprep.mubr.f32.mxu0 0.0
    %1178 = vmatmul.mubr.f32.gmra.mrb[0].mxu0 %v1108
    %v1179 = vpop.f32.mrb[0].mxu0
    %v1180 = vadd.f32 %v1100, %v1179
    %v1181 = vpop.f32.mrb[0].mxu0
    %v1182 = vadd.f32 %v1104, %v1181
    %1183 = vmatprep.mubr.f32.mxu0 0.0
    %1184 = vmatmul.mubr.f32.gmra.mrb[0].mxu0 %v1111
    %v1185 = vpop.f32.mrb[0].mxu0
    %v1186 = vadd.f32 %v1100, %v1185
    %v1187 = vpop.f32.mrb[0].mxu0
    %v1188 = vadd.f32 %v1104, %v1187
    %1189 = vdwg.mxu0
    %v1190 = vld [vmem:[%s8] sm:$0xf]
    %v1192 = vsel %vm125, %v1190, 0
    %v1195 = vsel %vm125, %v1182, 0
    %v1198 = vsel %vm125, %v1188, 0
    %1200 = vmatprep.subr.mxu0 0.0
    %1201 = vmatpush1.xpose.msra.mxu0 %v1195
    %1202 = vmatprep.subr.mxu0 0.0
    %1203 = vmatpush1.xpose.msra.mxu0 %v1198
    %1204 = vmatprep.subr.mxu0 0.0
    %1205 = vmatpush1.xpose.msra.mxu0 0.0
    %1206 = vmatprep.subr.mxu0 0.0
    %1207 = vmatpush1.xpose.msra.mxu0 0.0
    %1208 = vmatprep.subr.mxu0 0.0
    %1209 = vmatpush1.xpose.msra.mxu0 0.0
    %1210 = vmatprep.subr.mxu0 0.0
    %1211 = vmatpush1.xpose.msra.mxu0 0.0
    %1212 = vmatprep.subr.mxu0 0.0
    %1213 = vmatpush1.xpose.msra.mxu0 0.0
    %1214 = vmatprep.subr.mxu0 0.0
    %1215 = vmatpush1.xpose.msra.mxu0 0.0
    %1216 = vmatprep.subr.mxu0 0.0
    %1217 = vmatpush1.xpose.msra.mxu0 0.0
    %1218 = vmatprep.subr.mxu0 0.0
    %1219 = vmatpush1.xpose.msra.mxu0 0.0
    %1220 = vmatprep.subr.mxu0 0.0
    %1221 = vmatpush1.xpose.msra.mxu0 0.0
    %1222 = vmatprep.subr.mxu0 0.0
    %1223 = vmatpush1.xpose.msra.mxu0 0.0
    %1224 = vmatprep.subr.mxu0 0.0
    %1225 = vmatpush1.xpose.msra.mxu0 0.0
    %1226 = vmatprep.subr.mxu0 0.0
    %1227 = vmatpush1.xpose.msra.mxu0 0.0
    %1228 = vmatprep.subr.mxu0 0.0
    %1229 = vmatpush1.xpose.msra.mxu0 0.0
    %1230 = vmatprep.subr.mxu0 0.0
    %1231 = vmatpush1.xpose.msra.mxu0 0.0
    %1232 = vmatprep.subr.mxu0 0.0
    %1233 = vmatpush1.xpose.msra.mxu0 0.0
    %1234 = vmatprep.subr.mxu0 0.0
    %1235 = vmatpush1.xpose.msra.mxu0 0.0
    %1236 = vmatprep.subr.mxu0 0.0
    %1237 = vmatpush1.xpose.msra.mxu0 0.0
    %1238 = vmatprep.subr.mxu0 0.0
    %1239 = vmatpush1.xpose.msra.mxu0 0.0
    %1240 = vmatprep.subr.mxu0 0.0
    %1241 = vmatpush1.xpose.msra.mxu0 0.0
    %1242 = vmatprep.subr.mxu0 0.0
    %1243 = vmatpush1.xpose.msra.mxu0 0.0
    %1244 = vmatprep.subr.mxu0 0.0
    %1245 = vmatpush1.xpose.msra.mxu0 0.0
    %1246 = vmatprep.subr.mxu0 0.0
    %1247 = vmatpush1.xpose.msra.mxu0 0.0
    %1248 = vmatprep.subr.mxu0 0.0
    %1249 = vmatpush1.xpose.msra.mxu0 0.0
    %1250 = vmatprep.subr.mxu0 0.0
    %1251 = vmatpush1.xpose.msra.mxu0 0.0
    %1252 = vmatprep.subr.mxu0 0.0
    %1253 = vmatpush1.xpose.msra.mxu0 0.0
    %1254 = vmatprep.subr.mxu0 0.0
    %1255 = vmatpush1.xpose.msra.mxu0 0.0
    %1256 = vmatprep.subr.mxu0 0.0
    %1257 = vmatpush1.xpose.msra.mxu0 0.0
    %1258 = vmatprep.subr.mxu0 0.0
    %1259 = vmatpush1.xpose.msra.mxu0 0.0
    %1260 = vmatprep.subr.mxu0 0.0
    %1261 = vmatpush1.xpose.msra.mxu0 0.0
    %1262 = vmatprep.subr.mxu0 0.0
    %1263 = vmatpush1.xpose.msra.mxu0 0.0
    %1264 = vmatprep.mubr.f32.mxu0 0.0
    %1265 = vmatmul.mubr.f32.gmra.mrb[0].mxu0 %v1192
    %v1266 = vpop.f32.mrb[0].mxu0
    %v1267 = vadd.f32 0.0, %v1266
    %v1268 = vpop.f32.mrb[0].mxu0
    %1269 = vdwg.mxu0
    %v1270 = vld [vmem:[%s9] sm:$0xff]
    %v1271 = vld [vmem:[%s9 + $0x8] sm:$0xff]
    %1274 = vrot.lane.b32.xlu0 %v1180, 64
    %v1275 = vpop.permute.xlu0 %1274
    %1276 = vrot.lane.b32.xlu0 %v1186, 64
    %v1277 = vpop.permute.xlu0 %1276
    %vm1278 = vcmask 130048
    %v1279 = vsel %vm1278, %v1180, 0
    %v1281 = vsel %vm1278, %v1186, 0
    %v1283 = vsel %vm1278, %v1275, 0
    %v1285 = vsel %vm1278, %v1277, 0
    %1287 = vmatprep.subr.mxu0 0.0
    %1288 = vmatpush1.xpose.msra.mxu0 %v1283
    %1289 = vmatprep.subr.mxu0 0.0
    %1290 = vmatpush1.xpose.msra.mxu0 %v1285
    %1291 = vmatprep.subr.mxu0 0.0
    %1292 = vmatpush1.xpose.msra.mxu0 0.0
    %1293 = vmatprep.subr.mxu0 0.0
    %1294 = vmatpush1.xpose.msra.mxu0 0.0
    %1295 = vmatprep.subr.mxu0 0.0
    %1296 = vmatpush1.xpose.msra.mxu0 0.0
    %1297 = vmatprep.subr.mxu0 0.0
    %1298 = vmatpush1.xpose.msra.mxu0 0.0
    %1299 = vmatprep.subr.mxu0 0.0
    %1300 = vmatpush1.xpose.msra.mxu0 0.0
    %1301 = vmatprep.subr.mxu0 0.0
    %1302 = vmatpush1.xpose.msra.mxu0 0.0
    %1303 = vmatprep.subr.mxu0 0.0
    %1304 = vmatpush1.xpose.msra.mxu0 0.0
    %1305 = vmatprep.subr.mxu0 0.0
    %1306 = vmatpush1.xpose.msra.mxu0 0.0
    %1307 = vmatprep.subr.mxu0 0.0
    %1308 = vmatpush1.xpose.msra.mxu0 0.0
    %1309 = vmatprep.subr.mxu0 0.0
    %1310 = vmatpush1.xpose.msra.mxu0 0.0
    %1311 = vmatprep.subr.mxu0 0.0
    %1312 = vmatpush1.xpose.msra.mxu0 0.0
    %1313 = vmatprep.subr.mxu0 0.0
    %1314 = vmatpush1.xpose.msra.mxu0 0.0
    %1315 = vmatprep.subr.mxu0 0.0
    %1316 = vmatpush1.xpose.msra.mxu0 0.0
    %1317 = vmatprep.subr.mxu0 0.0
    %1318 = vmatpush1.xpose.msra.mxu0 0.0
    %1319 = vmatprep.subr.mxu0 0.0
    %1320 = vmatpush1.xpose.msra.mxu0 0.0
    %1321 = vmatprep.subr.mxu0 0.0
    %1322 = vmatpush1.xpose.msra.mxu0 0.0
    %1323 = vmatprep.subr.mxu0 0.0
    %1324 = vmatpush1.xpose.msra.mxu0 0.0
    %1325 = vmatprep.subr.mxu0 0.0
    %1326 = vmatpush1.xpose.msra.mxu0 0.0
    %1327 = vmatprep.subr.mxu0 0.0
    %1328 = vmatpush1.xpose.msra.mxu0 0.0
    %1329 = vmatprep.subr.mxu0 0.0
    %1330 = vmatpush1.xpose.msra.mxu0 0.0
    %1331 = vmatprep.subr.mxu0 0.0
    %1332 = vmatpush1.xpose.msra.mxu0 0.0
    %1333 = vmatprep.subr.mxu0 0.0
    %1334 = vmatpush1.xpose.msra.mxu0 0.0
    %1335 = vmatprep.subr.mxu0 0.0
    %1336 = vmatpush1.xpose.msra.mxu0 0.0
    %1337 = vmatprep.subr.mxu0 0.0
    %1338 = vmatpush1.xpose.msra.mxu0 0.0
    %1339 = vmatprep.subr.mxu0 0.0
    %1340 = vmatpush1.xpose.msra.mxu0 0.0
    %1341 = vmatprep.subr.mxu0 0.0
    %1342 = vmatpush1.xpose.msra.mxu0 0.0
    %1343 = vmatprep.subr.mxu0 0.0
    %1344 = vmatpush1.xpose.msra.mxu0 0.0
    %1345 = vmatprep.subr.mxu0 0.0
    %1346 = vmatpush1.xpose.msra.mxu0 0.0
    %1347 = vmatprep.subr.mxu0 0.0
    %1348 = vmatpush1.xpose.msra.mxu0 0.0
    %1349 = vmatprep.subr.mxu0 0.0
    %1350 = vmatpush1.xpose.msra.mxu0 0.0
    %1351 = vmatprep.mubr.f32.mxu0 0.0
    %1352 = vmatmul.mubr.f32.gmra.mrb[0].mxu0 %v1279
    %v1353 = vpop.f32.mrb[0].mxu0
    %v1354 = vadd.f32 %v1270, %v1353
    %v1355 = vpop.f32.mrb[0].mxu0
    %1356 = vmatprep.mubr.f32.mxu0 0.0
    %1357 = vmatmul.mubr.f32.gmra.mrb[0].mxu0 %v1281
    %v1358 = vpop.f32.mrb[0].mxu0
    %v1359 = vadd.f32 %v1271, %v1358
    %v1360 = vpop.f32.mrb[0].mxu0
    %1361 = vdwg.mxu0
    %v1362 = vsel %vm1278, %v1354, -inf
    %1363 = vmax.xlane.f32.xlu0 %v1362
    %v1364 = vpop.xlane.xlu0 %1363
    %v1365 = vsel %vm1278, %v1359, -inf
    %1366 = vmax.xlane.f32.xlu0 %v1365
    %v1367 = vpop.xlane.xlu0 %1366
    %v1368 = vsub.f32 %v1354, %v1364
    %v1369 = vsub.f32 %v1359, %v1367
    %v1370 = vmul.f32 %v1368, 1.442695
    %v1371 = vpow.pop %v1370
    %v1372 = vmul.f32 %v1369, 1.442695
    %v1373 = vpow.pop %v1372
    %v1374 = vsel %vm1278, %v1371, 0.0
    %1375 = vadd.xlane.f32.xlu0 %v1374
    %v1376 = vpop.xlane.xlu0 %1375
    %v1377 = vsel %vm1278, %v1373, 0.0
    %1378 = vadd.xlane.f32.xlu0 %v1377
    %v1379 = vpop.xlane.xlu0 %1378
    %v1380 = vrcp.pop %v1376
    %v1381 = vrcp.pop %v1379
    %v1382 = vmul.f32 %v1371, %v1380
    %v1383 = vmul.f32 %v1373, %v1381
    %v1384 = vlaneseq
    %v1385 = vshrl.u32 %v1384, 7
    %v1386 = vsub.s32 0, %v1385
    %v1387 = vrot.slane %v1267, %v1386
    %v1388 = vmul.f32 %v1382, %v1387
    %v1389 = vmul.f32 %v1383, %v1387
    %v1390 = vadd.f32 %v1388, 0.0
    %v1391 = vadd.f32 %v1389, 0.0
    %1392 = vrot.lane.b32.xlu0 %v1180, 112
    %v1393 = vpop.permute.xlu0 %1392
    %1394 = vrot.lane.b32.xlu0 %v1186, 112
    %v1395 = vpop.permute.xlu0 %1394
    %1396 = vrot.lane.b32.xlu0 %v1180, 48
    %v1397 = vpop.permute.xlu0 %1396
    %1398 = vrot.lane.b32.xlu0 %v1186, 48
    %v1399 = vpop.permute.xlu0 %1398
    %v1400 = vsel %vm1278, %v1393, 0
    %v1402 = vsel %vm1278, %v1395, 0
    %v1404 = vsel %vm1278, %v1397, 0
    %v1406 = vsel %vm1278, %v1399, 0
    %1408 = vmatprep.subr.mxu0 0.0
    %1409 = vmatpush1.xpose.msra.mxu0 %v1404
    %1410 = vmatprep.subr.mxu0 0.0
    %1411 = vmatpush1.xpose.msra.mxu0 %v1406
    %1412 = vmatprep.subr.mxu0 0.0
    %1413 = vmatpush1.xpose.msra.mxu0 0.0
    %1414 = vmatprep.subr.mxu0 0.0
    %1415 = vmatpush1.xpose.msra.mxu0 0.0
    %1416 = vmatprep.subr.mxu0 0.0
    %1417 = vmatpush1.xpose.msra.mxu0 0.0
    %1418 = vmatprep.subr.mxu0 0.0
    %1419 = vmatpush1.xpose.msra.mxu0 0.0
    %1420 = vmatprep.subr.mxu0 0.0
    %1421 = vmatpush1.xpose.msra.mxu0 0.0
    %1422 = vmatprep.subr.mxu0 0.0
    %1423 = vmatpush1.xpose.msra.mxu0 0.0
    %1424 = vmatprep.subr.mxu0 0.0
    %1425 = vmatpush1.xpose.msra.mxu0 0.0
    %1426 = vmatprep.subr.mxu0 0.0
    %1427 = vmatpush1.xpose.msra.mxu0 0.0
    %1428 = vmatprep.subr.mxu0 0.0
    %1429 = vmatpush1.xpose.msra.mxu0 0.0
    %1430 = vmatprep.subr.mxu0 0.0
    %1431 = vmatpush1.xpose.msra.mxu0 0.0
    %1432 = vmatprep.subr.mxu0 0.0
    %1433 = vmatpush1.xpose.msra.mxu0 0.0
    %1434 = vmatprep.subr.mxu0 0.0
    %1435 = vmatpush1.xpose.msra.mxu0 0.0
    %1436 = vmatprep.subr.mxu0 0.0
    %1437 = vmatpush1.xpose.msra.mxu0 0.0
    %1438 = vmatprep.subr.mxu0 0.0
    %1439 = vmatpush1.xpose.msra.mxu0 0.0
    %1440 = vmatprep.subr.mxu0 0.0
    %1441 = vmatpush1.xpose.msra.mxu0 0.0
    %1442 = vmatprep.subr.mxu0 0.0
    %1443 = vmatpush1.xpose.msra.mxu0 0.0
    %1444 = vmatprep.subr.mxu0 0.0
    %1445 = vmatpush1.xpose.msra.mxu0 0.0
    %1446 = vmatprep.subr.mxu0 0.0
    %1447 = vmatpush1.xpose.msra.mxu0 0.0
    %1448 = vmatprep.subr.mxu0 0.0
    %1449 = vmatpush1.xpose.msra.mxu0 0.0
    %1450 = vmatprep.subr.mxu0 0.0
    %1451 = vmatpush1.xpose.msra.mxu0 0.0
    %1452 = vmatprep.subr.mxu0 0.0
    %1453 = vmatpush1.xpose.msra.mxu0 0.0
    %1454 = vmatprep.subr.mxu0 0.0
    %1455 = vmatpush1.xpose.msra.mxu0 0.0
    %1456 = vmatprep.subr.mxu0 0.0
    %1457 = vmatpush1.xpose.msra.mxu0 0.0
    %1458 = vmatprep.subr.mxu0 0.0
    %1459 = vmatpush1.xpose.msra.mxu0 0.0
    %1460 = vmatprep.subr.mxu0 0.0
    %1461 = vmatpush1.xpose.msra.mxu0 0.0
    %1462 = vmatprep.subr.mxu0 0.0
    %1463 = vmatpush1.xpose.msra.mxu0 0.0
    %1464 = vmatprep.subr.mxu0 0.0
    %1465 = vmatpush1.xpose.msra.mxu0 0.0
    %1466 = vmatprep.subr.mxu0 0.0
    %1467 = vmatpush1.xpose.msra.mxu0 0.0
    %1468 = vmatprep.subr.mxu0 0.0
    %1469 = vmatpush1.xpose.msra.mxu0 0.0
    %1470 = vmatprep.subr.mxu0 0.0
    %1471 = vmatpush1.xpose.msra.mxu0 0.0
    %1472 = vmatprep.mubr.f32.mxu0 0.0
    %1473 = vmatmul.mubr.f32.gmra.mrb[0].mxu0 %v1400
    %v1474 = vpop.f32.mrb[0].mxu0
    %v1475 = vadd.f32 %v1270, %v1474
    %v1476 = vpop.f32.mrb[0].mxu0
    %1477 = vmatprep.mubr.f32.mxu0 0.0
    %1478 = vmatmul.mubr.f32.gmra.mrb[0].mxu0 %v1402
    %v1479 = vpop.f32.mrb[0].mxu0
    %v1480 = vadd.f32 %v1271, %v1479
    %v1481 = vpop.f32.mrb[0].mxu0
    %1482 = vdwg.mxu0
    %v1483 = vsel %vm1278, %v1475, -inf
    %1484 = vmax.xlane.f32.xlu0 %v1483
    %v1485 = vpop.xlane.xlu0 %1484
    %v1486 = vsel %vm1278, %v1480, -inf
    %1487 = vmax.xlane.f32.xlu0 %v1486
    %v1488 = vpop.xlane.xlu0 %1487
    %v1489 = vsub.f32 %v1475, %v1485
    %v1490 = vsub.f32 %v1480, %v1488
    %v1491 = vmul.f32 %v1489, 1.442695
    %v1492 = vpow.pop %v1491
    %v1493 = vmul.f32 %v1490, 1.442695
    %v1494 = vpow.pop %v1493
    %v1495 = vsel %vm1278, %v1492, 0.0
    %1496 = vadd.xlane.f32.xlu0 %v1495
    %v1497 = vpop.xlane.xlu0 %1496
    %v1498 = vsel %vm1278, %v1494, 0.0
    %1499 = vadd.xlane.f32.xlu0 %v1498
    %v1500 = vpop.xlane.xlu0 %1499
    %v1501 = vrcp.pop %v1497
    %v1502 = vrcp.pop %v1500
    %v1503 = vmul.f32 %v1492, %v1501
    %v1504 = vmul.f32 %v1494, %v1502
    %v1505 = vlaneseq
    %v1506 = vshrl.u32 %v1505, 7
    %v1507 = vsub.s32 1, %v1506
    %v1508 = vrot.slane %v1267, %v1507
    %v1509 = vmul.f32 %v1503, %v1508
    %v1510 = vmul.f32 %v1504, %v1508
    %v1511 = vadd.f32 %v1390, %v1509
    %v1512 = vadd.f32 %v1391, %v1510
    %1513 = vrot.lane.b32.xlu0 %v1180, 96
    %v1514 = vpop.permute.xlu0 %1513
    %1515 = vrot.lane.b32.xlu0 %v1186, 96
    %v1516 = vpop.permute.xlu0 %1515
    %1517 = vrot.lane.b32.xlu0 %v1180, 32
    %v1518 = vpop.permute.xlu0 %1517
    %1519 = vrot.lane.b32.xlu0 %v1186, 32
    %v1520 = vpop.permute.xlu0 %1519
    %v1521 = vsel %vm1278, %v1514, 0
    %v1523 = vsel %vm1278, %v1516, 0
    %v1525 = vsel %vm1278, %v1518, 0
    %v1527 = vsel %vm1278, %v1520, 0
    %1529 = vmatprep.subr.mxu0 0.0
    %1530 = vmatpush1.xpose.msra.mxu0 %v1525
    %1531 = vmatprep.subr.mxu0 0.0
    %1532 = vmatpush1.xpose.msra.mxu0 %v1527
    %1533 = vmatprep.subr.mxu0 0.0
    %1534 = vmatpush1.xpose.msra.mxu0 0.0
    %1535 = vmatprep.subr.mxu0 0.0
    %1536 = vmatpush1.xpose.msra.mxu0 0.0
    %1537 = vmatprep.subr.mxu0 0.0
    %1538 = vmatpush1.xpose.msra.mxu0 0.0
    %1539 = vmatprep.subr.mxu0 0.0
    %1540 = vmatpush1.xpose.msra.mxu0 0.0
    %1541 = vmatprep.subr.mxu0 0.0
    %1542 = vmatpush1.xpose.msra.mxu0 0.0
    %1543 = vmatprep.subr.mxu0 0.0
    %1544 = vmatpush1.xpose.msra.mxu0 0.0
    %1545 = vmatprep.subr.mxu0 0.0
    %1546 = vmatpush1.xpose.msra.mxu0 0.0
    %1547 = vmatprep.subr.mxu0 0.0
    %1548 = vmatpush1.xpose.msra.mxu0 0.0
    %1549 = vmatprep.subr.mxu0 0.0
    %1550 = vmatpush1.xpose.msra.mxu0 0.0
    %1551 = vmatprep.subr.mxu0 0.0
    %1552 = vmatpush1.xpose.msra.mxu0 0.0
    %1553 = vmatprep.subr.mxu0 0.0
    %1554 = vmatpush1.xpose.msra.mxu0 0.0
    %1555 = vmatprep.subr.mxu0 0.0
    %1556 = vmatpush1.xpose.msra.mxu0 0.0
    %1557 = vmatprep.subr.mxu0 0.0
    %1558 = vmatpush1.xpose.msra.mxu0 0.0
    %1559 = vmatprep.subr.mxu0 0.0
    %1560 = vmatpush1.xpose.msra.mxu0 0.0
    %1561 = vmatprep.subr.mxu0 0.0
    %1562 = vmatpush1.xpose.msra.mxu0 0.0
    %1563 = vmatprep.subr.mxu0 0.0
    %1564 = vmatpush1.xpose.msra.mxu0 0.0
    %1565 = vmatprep.subr.mxu0 0.0
    %1566 = vmatpush1.xpose.msra.mxu0 0.0
    %1567 = vmatprep.subr.mxu0 0.0
    %1568 = vmatpush1.xpose.msra.mxu0 0.0
    %1569 = vmatprep.subr.mxu0 0.0
    %1570 = vmatpush1.xpose.msra.mxu0 0.0
    %1571 = vmatprep.subr.mxu0 0.0
    %1572 = vmatpush1.xpose.msra.mxu0 0.0
    %1573 = vmatprep.subr.mxu0 0.0
    %1574 = vmatpush1.xpose.msra.mxu0 0.0
    %1575 = vmatprep.subr.mxu0 0.0
    %1576 = vmatpush1.xpose.msra.mxu0 0.0
    %1577 = vmatprep.subr.mxu0 0.0
    %1578 = vmatpush1.xpose.msra.mxu0 0.0
    %1579 = vmatprep.subr.mxu0 0.0
    %1580 = vmatpush1.xpose.msra.mxu0 0.0
    %1581 = vmatprep.subr.mxu0 0.0
    %1582 = vmatpush1.xpose.msra.mxu0 0.0
    %1583 = vmatprep.subr.mxu0 0.0
    %1584 = vmatpush1.xpose.msra.mxu0 0.0
    %1585 = vmatprep.subr.mxu0 0.0
    %1586 = vmatpush1.xpose.msra.mxu0 0.0
    %1587 = vmatprep.subr.mxu0 0.0
    %1588 = vmatpush1.xpose.msra.mxu0 0.0
    %1589 = vmatprep.subr.mxu0 0.0
    %1590 = vmatpush1.xpose.msra.mxu0 0.0
    %1591 = vmatprep.subr.mxu0 0.0
    %1592 = vmatpush1.xpose.msra.mxu0 0.0
    %1593 = vmatprep.mubr.f32.mxu0 0.0
    %1594 = vmatmul.mubr.f32.gmra.mrb[0].mxu0 %v1521
    %v1595 = vpop.f32.mrb[0].mxu0
    %v1596 = vadd.f32 %v1270, %v1595
    %v1597 = vpop.f32.mrb[0].mxu0
    %1598 = vmatprep.mubr.f32.mxu0 0.0
    %1599 = vmatmul.mubr.f32.gmra.mrb[0].mxu0 %v1523
    %v1600 = vpop.f32.mrb[0].mxu0
    %v1601 = vadd.f32 %v1271, %v1600
    %v1602 = vpop.f32.mrb[0].mxu0
    %1603 = vdwg.mxu0
    %v1604 = vsel %vm1278, %v1596, -inf
    %1605 = vmax.xlane.f32.xlu0 %v1604
    %v1606 = vpop.xlane.xlu0 %1605
    %v1607 = vsel %vm1278, %v1601, -inf
    %1608 = vmax.xlane.f32.xlu0 %v1607
    %v1609 = vpop.xlane.xlu0 %1608
    %v1610 = vsub.f32 %v1596, %v1606
    %v1611 = vsub.f32 %v1601, %v1609
    %v1612 = vmul.f32 %v1610, 1.442695
    %v1613 = vpow.pop %v1612
    %v1614 = vmul.f32 %v1611, 1.442695
    %v1615 = vpow.pop %v1614
    %v1616 = vsel %vm1278, %v1613, 0.0
    %1617 = vadd.xlane.f32.xlu0 %v1616
    %v1618 = vpop.xlane.xlu0 %1617
    %v1619 = vsel %vm1278, %v1615, 0.0
    %1620 = vadd.xlane.f32.xlu0 %v1619
    %v1621 = vpop.xlane.xlu0 %1620
    %v1622 = vrcp.pop %v1618
    %v1623 = vrcp.pop %v1621
    %v1624 = vmul.f32 %v1613, %v1622
    %v1625 = vmul.f32 %v1615, %v1623
    %v1626 = vlaneseq
    %v1627 = vshrl.u32 %v1626, 7
    %v1628 = vsub.s32 2, %v1627
    %v1629 = vrot.slane %v1267, %v1628
    %v1630 = vmul.f32 %v1624, %v1629
    %v1631 = vmul.f32 %v1625, %v1629
    %v1632 = vadd.f32 %v1511, %v1630
    %v1633 = vadd.f32 %v1512, %v1631
    %1634 = vrot.lane.b32.xlu0 %v1180, 80
    %v1635 = vpop.permute.xlu0 %1634
    %1636 = vrot.lane.b32.xlu0 %v1186, 80
    %v1637 = vpop.permute.xlu0 %1636
    %1638 = vrot.lane.b32.xlu0 %v1180, 16
    %v1639 = vpop.permute.xlu0 %1638
    %1640 = vrot.lane.b32.xlu0 %v1186, 16
    %v1641 = vpop.permute.xlu0 %1640
    %v1642 = vsel %vm1278, %v1635, 0
    %v1644 = vsel %vm1278, %v1637, 0
    %v1646 = vsel %vm1278, %v1639, 0
    %v1648 = vsel %vm1278, %v1641, 0
    %1650 = vmatprep.subr.mxu0 0.0
    %1651 = vmatpush1.xpose.msra.mxu0 %v1646
    %1652 = vmatprep.subr.mxu0 0.0
    %1653 = vmatpush1.xpose.msra.mxu0 %v1648
    %1654 = vmatprep.subr.mxu0 0.0
    %1655 = vmatpush1.xpose.msra.mxu0 0.0
    %1656 = vmatprep.subr.mxu0 0.0
    %1657 = vmatpush1.xpose.msra.mxu0 0.0
    %1658 = vmatprep.subr.mxu0 0.0
    %1659 = vmatpush1.xpose.msra.mxu0 0.0
    %1660 = vmatprep.subr.mxu0 0.0
    %1661 = vmatpush1.xpose.msra.mxu0 0.0
    %1662 = vmatprep.subr.mxu0 0.0
    %1663 = vmatpush1.xpose.msra.mxu0 0.0
    %1664 = vmatprep.subr.mxu0 0.0
    %1665 = vmatpush1.xpose.msra.mxu0 0.0
    %1666 = vmatprep.subr.mxu0 0.0
    %1667 = vmatpush1.xpose.msra.mxu0 0.0
    %1668 = vmatprep.subr.mxu0 0.0
    %1669 = vmatpush1.xpose.msra.mxu0 0.0
    %1670 = vmatprep.subr.mxu0 0.0
    %1671 = vmatpush1.xpose.msra.mxu0 0.0
    %1672 = vmatprep.subr.mxu0 0.0
    %1673 = vmatpush1.xpose.msra.mxu0 0.0
    %1674 = vmatprep.subr.mxu0 0.0
    %1675 = vmatpush1.xpose.msra.mxu0 0.0
    %1676 = vmatprep.subr.mxu0 0.0
    %1677 = vmatpush1.xpose.msra.mxu0 0.0
    %1678 = vmatprep.subr.mxu0 0.0
    %1679 = vmatpush1.xpose.msra.mxu0 0.0
    %1680 = vmatprep.subr.mxu0 0.0
    %1681 = vmatpush1.xpose.msra.mxu0 0.0
    %1682 = vmatprep.subr.mxu0 0.0
    %1683 = vmatpush1.xpose.msra.mxu0 0.0
    %1684 = vmatprep.subr.mxu0 0.0
    %1685 = vmatpush1.xpose.msra.mxu0 0.0
    %1686 = vmatprep.subr.mxu0 0.0
    %1687 = vmatpush1.xpose.msra.mxu0 0.0
    %1688 = vmatprep.subr.mxu0 0.0
    %1689 = vmatpush1.xpose.msra.mxu0 0.0
    %1690 = vmatprep.subr.mxu0 0.0
    %1691 = vmatpush1.xpose.msra.mxu0 0.0
    %1692 = vmatprep.subr.mxu0 0.0
    %1693 = vmatpush1.xpose.msra.mxu0 0.0
    %1694 = vmatprep.subr.mxu0 0.0
    %1695 = vmatpush1.xpose.msra.mxu0 0.0
    %1696 = vmatprep.subr.mxu0 0.0
    %1697 = vmatpush1.xpose.msra.mxu0 0.0
    %1698 = vmatprep.subr.mxu0 0.0
    %1699 = vmatpush1.xpose.msra.mxu0 0.0
    %1700 = vmatprep.subr.mxu0 0.0
    %1701 = vmatpush1.xpose.msra.mxu0 0.0
    %1702 = vmatprep.subr.mxu0 0.0
    %1703 = vmatpush1.xpose.msra.mxu0 0.0
    %1704 = vmatprep.subr.mxu0 0.0
    %1705 = vmatpush1.xpose.msra.mxu0 0.0
    %1706 = vmatprep.subr.mxu0 0.0
    %1707 = vmatpush1.xpose.msra.mxu0 0.0
    %1708 = vmatprep.subr.mxu0 0.0
    %1709 = vmatpush1.xpose.msra.mxu0 0.0
    %1710 = vmatprep.subr.mxu0 0.0
    %1711 = vmatpush1.xpose.msra.mxu0 0.0
    %1712 = vmatprep.subr.mxu0 0.0
    %1713 = vmatpush1.xpose.msra.mxu0 0.0
    %1714 = vmatprep.mubr.f32.mxu0 0.0
    %1715 = vmatmul.mubr.f32.gmra.mrb[0].mxu0 %v1642
    %v1716 = vpop.f32.mrb[0].mxu0
    %v1717 = vadd.f32 %v1270, %v1716
    %v1718 = vpop.f32.mrb[0].mxu0
    %1719 = vmatprep.mubr.f32.mxu0 0.0
    %1720 = vmatmul.mubr.f32.gmra.mrb[0].mxu0 %v1644
    %v1721 = vpop.f32.mrb[0].mxu0
    %v1722 = vadd.f32 %v1271, %v1721
    %v1723 = vpop.f32.mrb[0].mxu0
    %1724 = vdwg.mxu0
    %v1725 = vsel %vm1278, %v1717, -inf
    %1726 = vmax.xlane.f32.xlu0 %v1725
    %v1727 = vpop.xlane.xlu0 %1726
    %v1728 = vsel %vm1278, %v1722, -inf
    %1729 = vmax.xlane.f32.xlu0 %v1728
    %v1730 = vpop.xlane.xlu0 %1729
    %v1731 = vsub.f32 %v1717, %v1727
    %v1732 = vsub.f32 %v1722, %v1730
    %v1733 = vmul.f32 %v1731, 1.442695
    %v1734 = vpow.pop %v1733
    %v1735 = vmul.f32 %v1732, 1.442695
    %v1736 = vpow.pop %v1735
    %v1737 = vsel %vm1278, %v1734, 0.0
    %1738 = vadd.xlane.f32.xlu0 %v1737
    %v1739 = vpop.xlane.xlu0 %1738
    %v1740 = vsel %vm1278, %v1736, 0.0
    %1741 = vadd.xlane.f32.xlu0 %v1740
    %v1742 = vpop.xlane.xlu0 %1741
    %v1743 = vrcp.pop %v1739
    %v1744 = vrcp.pop %v1742
    %v1745 = vmul.f32 %v1734, %v1743
    %v1746 = vmul.f32 %v1736, %v1744
    %v1747 = vlaneseq
    %v1748 = vshrl.u32 %v1747, 7
    %v1749 = vsub.s32 3, %v1748
    %v1750 = vrot.slane %v1267, %v1749
    %v1751 = vmul.f32 %v1745, %v1750
    %v1752 = vmul.f32 %v1746, %v1750
    %v1753 = vadd.f32 %v1632, %v1751
    %v1754 = vadd.f32 %v1633, %v1752
    %v1755 = vsel %vm1278, %v1753, 0.0
    %1756 = vadd.xlane.f32.xlu0 %v1755
    %v1757 = vpop.xlane.xlu0 %1756
    %v1758 = vsel %vm1278, %v1754, 0.0
    %1759 = vadd.xlane.f32.xlu0 %v1758
    %v1760 = vpop.xlane.xlu0 %1759
    %v1761 = vld [vmem:[#allocation3] sm:$0x1]
    %v1763 = vlaneseq
    %v1764 = vshrl.u32 %v1763, 7
    %v1765 = vsub.s32 0, %v1764
    %v1766 = vrot.slane %v1761, %v1765
    %v1768 = vadd.f32 %v1757, %v1766
    %v1769 = vadd.f32 %v1760, %v1766
    %vm1770 = vcmask 7168
    %1771 = vst.msk [vmem:[%s11] sm:$0xff] %vm1770, %v1768
    %1772 = vst.msk [vmem:[%s11 + $0x8] sm:$0xff] %vm1770, %v1769
    // Predicated region
    $region62: #{tpu_custom_call.1} parent=1 // pred_check
      _
    $region63: #{tpu_custom_call.1} parent=1 // pred_check_branch
      %1774 = sbr.rel (0) target = $region65
    $region64: #{tpu_custom_call.1} parent=1 // pred_region
      _
    $region65: #{tpu_custom_call.1} parent=1 // pred_fallthru
      _
    // Predicated region
    $region66: #{tpu_custom_call.1} parent=1 // pred_check
      _
    $region67: #{tpu_custom_call.1} parent=1 // pred_check_branch
      %1776 = sbr.rel (0) target = $region69
    $region68: #{tpu_custom_call.1} parent=1 // pred_region
      _
    $region69: #{tpu_custom_call.1} parent=1 // pred_fallthru
      _
    %1777 = vsyncpa [#allocation5], 1
    %1778 = vsyncpa [#allocation7], 1
    %1779 = vsyncpa [#allocation10], 1

</llo_original>
